<compile_context>
chip_gen: v7x
topology: tpu7x:2x2x1
jax: 0.10.0
libtpu: 0.0.40
codegen_flags: <defaults>
</compile_context>

<pallas_src>
import functools
import math

import numpy as np

import jax
import jax.numpy as jnp
from jax.experimental import pallas as pl
from jax.experimental.pallas import tpu as pltpu


# ----------------------------------------------------------------------------
# Bilinear-resize operators (torch align_corners=False), built at trace time
# as numpy constants.  Full flattened-spatial operator is kron(Rh, Rw).
# ----------------------------------------------------------------------------
def _bilinear_matrix(out_size, in_size):
    scale = in_size / out_size
    i = np.arange(out_size, dtype=np.float64)
    src = np.maximum(scale * (i + 0.5) - 0.5, 0.0)
    i0 = np.clip(np.floor(src).astype(np.int64), 0, in_size - 1)
    i1 = np.minimum(i0 + 1, in_size - 1)
    l1 = (src - i0).astype(np.float32)
    l0 = (1.0 - l1).astype(np.float32)
    m = np.zeros((out_size, in_size), np.float32)
    rows = np.arange(out_size)
    m[rows, i0] += l0
    m[rows, i1] += l1
    return m


def _resize_operator_t(out_h, out_w, in_h, in_w):
    """(in_h*in_w, out_h*out_w) operator so that y_flat = x_flat @ R^T."""
    r = np.kron(_bilinear_matrix(out_h, in_h), _bilinear_matrix(out_w, in_w))
    return jnp.asarray(r.T, dtype=jnp.float32)


# ----------------------------------------------------------------------------
# Fused BiFPN kernel: 3x (1x1 conv) + MHA on P5 + bilinear resizes + adds.
# One grid step per batch element; everything stays in VMEM.
# ----------------------------------------------------------------------------
def _make_bifpn_kernel(num_heads, head_dim, matmul_dtype):
    scale = 1.0 / math.sqrt(head_dim)

    def mm(a, b):
        return jnp.dot(a.astype(matmul_dtype), b.astype(matmul_dtype),
                       preferred_element_type=jnp.float32)

    def kernel(p3_ref, p4_ref, p5_ref,
               w3_ref, b3_ref, w4_ref, b4_ref, w5_ref, b5_ref,
               wq_ref, bq_ref, wk_ref, bk_ref, wv_ref, bv_ref,
               wo_ref, bo_ref,
               r34t_ref, r54t_ref, r44t_ref,
               p3td_ref, p4td_ref, p5attn_ref):
        # ---- 1x1 convs: (Cout, Cin) @ (Cin, H*W); spatial on the lane axis ----
        p3_in = mm(w3_ref[...], p3_ref[0]) + b3_ref[...]            # (C, L3)
        p4_in = mm(w4_ref[...], p4_ref[0]) + b4_ref[...]            # (C, L4)
        p5_in = mm(w5_ref[...], p5_ref[0]) + b5_ref[...]            # (C, L5)

        # ---- multi-head self-attention over P5 (single step per batch) ----
        x = p5_in.T                                                  # (L5, C)
        q = mm(x, wq_ref[...]) + bq_ref[...]                         # (L5, C)
        k = mm(x, wk_ref[...]) + bk_ref[...]
        v = mm(x, wv_ref[...]) + bv_ref[...]
        head_outs = []
        for h in range(num_heads):                                   # unrolled
            lo, hi = h * head_dim, (h + 1) * head_dim
            qh, kh, vh = q[:, lo:hi], k[:, lo:hi], v[:, lo:hi]
            s = jnp.einsum("ld,md->lm",
                           (qh * scale).astype(matmul_dtype),
                           kh.astype(matmul_dtype),
                           preferred_element_type=jnp.float32)       # (L5, L5)
            s = s - jnp.max(s, axis=-1, keepdims=True)
            p = jnp.exp(s)
            p = p / jnp.sum(p, axis=-1, keepdims=True)               # f32 softmax
            head_outs.append(mm(p, vh))                              # (L5, d)
        oh = jnp.concatenate(head_outs, axis=-1)                     # (L5, C)
        attn = mm(oh, wo_ref[...]) + bo_ref[...]                     # (L5, C)
        p5_attn = attn.T                                             # (C, L5)
        p5attn_ref[0] = p5_attn.astype(p5attn_ref.dtype)

        # ---- bilinear resizes as flattened-spatial matmuls (R = Rh (x) Rw) ----
        p3_down = mm(p3_in, r34t_ref[...])                           # (C, L4)
        p5_up = mm(p5_attn, r54t_ref[...])                           # (C, L4)
        p4_td = p4_in + p5_up                                        # dropout == identity (eval)
        p4td_ref[0] = p4_td.astype(p4td_ref.dtype)
        p4_up = mm(p4_td, r44t_ref[...])                             # same-size resize (exact identity op)
        p3td_ref[0] = (p3_down + p4_up).astype(p3td_ref.dtype)       # dropout == identity (eval)

    return kernel


# ----------------------------------------------------------------------------
# Public wrapper: takes / returns NCHW float32 tensors (like PyTorch).
# ----------------------------------------------------------------------------
def bifpn_forward(P3, P4, P5, params, num_heads=4, matmul_dtype=jnp.float32):
    B, Cin, H3, W3 = P3.shape
    _, _, H4, W4 = P4.shape
    _, _, H5, W5 = P5.shape
    C = params["w3"].shape[0]
    d = C // num_heads
    L3, L4, L5 = H3 * W3, H4 * W4, H5 * W5
    dtype = P3.dtype

    # Flatten spatial only (free metadata reshape; stays channel-major / NCHW).
    p3f = P3.reshape(B, Cin, L3)
    p4f = P4.reshape(B, Cin, L4)
    p5f = P5.reshape(B, Cin, L5)

    # 1x1 conv params as (Cout, Cin) matrices + column biases.
    w3m = params["w3"].reshape(C, Cin); b3c = params["b3"].reshape(C, 1)
    w4m = params["w4"].reshape(C, Cin); b4c = params["b4"].reshape(C, 1)
    w5m = params["w5"].reshape(C, Cin); b5c = params["b5"].reshape(C, 1)

    # Attention params, pre-transposed so the kernel computes x @ W (+ bias row).
    ipw, ipb = params["in_proj_w"], params["in_proj_b"]
    wq_t, wk_t, wv_t = ipw[:C].T, ipw[C:2 * C].T, ipw[2 * C:].T
    bq_r = ipb[:C].reshape(1, C)
    bk_r = ipb[C:2 * C].reshape(1, C)
    bv_r = ipb[2 * C:].reshape(1, C)
    wo_t = params["out_proj_w"].T
    bo_r = params["out_proj_b"].reshape(1, C)

    # Resize operators: compile-time constants (no in-jit scatter).
    r34_t = _resize_operator_t(H4, W4, H3, W3)   # (L3, L4)
    r54_t = _resize_operator_t(H4, W4, H5, W5)   # (L5, L4)
    r44_t = _resize_operator_t(H4, W4, H4, W4)   # (L4, L4) -- identity in this dataflow

    kernel = _make_bifpn_kernel(num_heads, d, matmul_dtype)

    full2d = lambda b: (0, 0)
    per_batch = lambda b: (b, 0, 0)

    out_shapes = (
        jax.ShapeDtypeStruct((B, C, L4), dtype),   # P3_td (spatial flattened)
        jax.ShapeDtypeStruct((B, C, L4), dtype),   # P4_td
        jax.ShapeDtypeStruct((B, C, L5), dtype),   # P5_attn
    )

    p3_td, p4_td, p5_attn = pl.pallas_call(
        kernel,
        out_shape=out_shapes,
        grid_spec=pltpu.PrefetchScalarGridSpec(
            num_scalar_prefetch=0,
            grid=(B,),
            in_specs=[
                pl.BlockSpec((1, Cin, L3), per_batch),
                pl.BlockSpec((1, Cin, L4), per_batch),
                pl.BlockSpec((1, Cin, L5), per_batch),
                pl.BlockSpec((C, Cin), full2d), pl.BlockSpec((C, 1), full2d),
                pl.BlockSpec((C, Cin), full2d), pl.BlockSpec((C, 1), full2d),
                pl.BlockSpec((C, Cin), full2d), pl.BlockSpec((C, 1), full2d),
                pl.BlockSpec((C, C), full2d), pl.BlockSpec((1, C), full2d),
                pl.BlockSpec((C, C), full2d), pl.BlockSpec((1, C), full2d),
                pl.BlockSpec((C, C), full2d), pl.BlockSpec((1, C), full2d),
                pl.BlockSpec((C, C), full2d), pl.BlockSpec((1, C), full2d),
                pl.BlockSpec((L3, L4), full2d),
                pl.BlockSpec((L5, L4), full2d),
                pl.BlockSpec((L4, L4), full2d),
            ],
            out_specs=[
                pl.BlockSpec((1, C, L4), per_batch),
                pl.BlockSpec((1, C, L4), per_batch),
                pl.BlockSpec((1, C, L5), per_batch),
            ],
        ),
        compiler_params=pltpu.CompilerParams(
            dimension_semantics=("parallel",),     # batches across v7x's 2 TCs
            vmem_limit_bytes=32 * 1024 * 1024,     # safe on v5e/v6e/v7x; usage is ~KBs
        ),
    )(p3f, p4f, p5f,
      w3m, b3c, w4m, b4c, w5m, b5c,
      wq_t, bq_r, wk_t, bk_r, wv_t, bv_r, wo_t, bo_r,
      r34_t, r54_t, r44_t)

    return (p3_td.reshape(B, C, H4, W4),
            p4_td.reshape(B, C, H4, W4),
            p5_attn.reshape(B, C, H5, W5))


def init_params(key, input_channels, num_channels):
    ks = jax.random.split(key, 9)
    s = 0.1
    return {
        "w3": s * jax.random.normal(ks[0], (num_channels, input_channels, 1, 1), jnp.float32),
        "b3": s * jax.random.normal(ks[1], (num_channels,), jnp.float32),
        "w4": s * jax.random.normal(ks[2], (num_channels, input_channels, 1, 1), jnp.float32),
        "b4": s * jax.random.normal(ks[3], (num_channels,), jnp.float32),
        "w5": s * jax.random.normal(ks[4], (num_channels, input_channels, 1, 1), jnp.float32),
        "b5": s * jax.random.normal(ks[5], (num_channels,), jnp.float32),
        "in_proj_w": s * jax.random.normal(ks[6], (3 * num_channels, num_channels), jnp.float32),
        "in_proj_b": jnp.zeros((3 * num_channels,), jnp.float32),
        "out_proj_w": s * jax.random.normal(ks[7], (num_channels, num_channels), jnp.float32),
        "out_proj_b": s * jax.random.normal(ks[8], (num_channels,), jnp.float32),
    }


if __name__ == "__main__":
    key = jax.random.PRNGKey(0)
    k_p3, k_p4, k_p5, k_params = jax.random.split(key, 4)

    B, Cin, Cmid = 2, 4, 16
    P3 = jax.random.normal(k_p3, (B, Cin, 16, 16), jnp.float32)
    P4 = jax.random.normal(k_p4, (B, Cin, 8, 8), jnp.float32)
    P5 = jax.random.normal(k_p5, (B, Cin, 4, 4), jnp.float32)
    params = init_params(k_params, Cin, Cmid)

    fwd = jax.jit(functools.partial(bifpn_forward, num_heads=4))
    P3_td, P4_td, P5_attn = fwd(P3, P4, P5, params)
    jax.block_until_ready((P3_td, P4_td, P5_attn))

    assert P3_td.shape == (B, Cmid, 8, 8)
    assert P4_td.shape == (B, Cmid, 8, 8)
    assert P5_attn.shape == (B, Cmid, 4, 4)
    print("KERNEL_OK")
</pallas_src>

<mosaic_0001>
module attributes {stable_mosaic.version = 11 : i64} {
  func.func @kernel(%arg0: i32, %arg1: memref<1x4x256xf32, #tpu.memory_space<vmem>>, %arg2: memref<1x4x64xf32, #tpu.memory_space<vmem>>, %arg3: memref<1x4x16xf32, #tpu.memory_space<vmem>>, %arg4: memref<16x4xf32, #tpu.memory_space<vmem>>, %arg5: memref<16x1xf32, #tpu.memory_space<vmem>>, %arg6: memref<16x4xf32, #tpu.memory_space<vmem>>, %arg7: memref<16x1xf32, #tpu.memory_space<vmem>>, %arg8: memref<16x4xf32, #tpu.memory_space<vmem>>, %arg9: memref<16x1xf32, #tpu.memory_space<vmem>>, %arg10: memref<16x16xf32, #tpu.memory_space<vmem>>, %arg11: memref<1x16xf32, #tpu.memory_space<vmem>>, %arg12: memref<16x16xf32, #tpu.memory_space<vmem>>, %arg13: memref<1x16xf32, #tpu.memory_space<vmem>>, %arg14: memref<16x16xf32, #tpu.memory_space<vmem>>, %arg15: memref<1x16xf32, #tpu.memory_space<vmem>>, %arg16: memref<16x16xf32, #tpu.memory_space<vmem>>, %arg17: memref<1x16xf32, #tpu.memory_space<vmem>>, %arg18: memref<256x64xf32, #tpu.memory_space<vmem>>, %arg19: memref<16x64xf32, #tpu.memory_space<vmem>>, %arg20: memref<64x64xf32, #tpu.memory_space<vmem>>, %arg21: memref<1x16x64xf32, #tpu.memory_space<vmem>>, %arg22: memref<1x16x64xf32, #tpu.memory_space<vmem>>, %arg23: memref<1x16x16xf32, #tpu.memory_space<vmem>>) attributes {dimension_semantics = [#tpu.dimension_semantics<parallel>], iteration_bounds = array<i64: 2>, scalar_prefetch = 0 : i64, scratch_operands = 0 : i64, tpu.core_type = #tpu.core_type<tc>, window_params = [{transform_indices = @transform_0, window_bounds = array<i64: 1, 4, 256>}, {transform_indices = @transform_1, window_bounds = array<i64: 1, 4, 64>}, {transform_indices = @transform_2, window_bounds = array<i64: 1, 4, 16>}, {pipeline_mode = #tpu.pipeline_mode<synchronous>, transform_indices = @transform_3, window_bounds = array<i64: 16, 4>}, {pipeline_mode = #tpu.pipeline_mode<synchronous>, transform_indices = @transform_4, window_bounds = array<i64: 16, 1>}, {pipeline_mode = #tpu.pipeline_mode<synchronous>, transform_indices = @transform_5, window_bounds = array<i64: 16, 4>}, {pipeline_mode = #tpu.pipeline_mode<synchronous>, transform_indices = @transform_6, window_bounds = array<i64: 16, 1>}, {pipeline_mode = #tpu.pipeline_mode<synchronous>, transform_indices = @transform_7, window_bounds = array<i64: 16, 4>}, {pipeline_mode = #tpu.pipeline_mode<synchronous>, transform_indices = @transform_8, window_bounds = array<i64: 16, 1>}, {pipeline_mode = #tpu.pipeline_mode<synchronous>, transform_indices = @transform_9, window_bounds = array<i64: 16, 16>}, {pipeline_mode = #tpu.pipeline_mode<synchronous>, transform_indices = @transform_10, window_bounds = array<i64: 1, 16>}, {pipeline_mode = #tpu.pipeline_mode<synchronous>, transform_indices = @transform_11, window_bounds = array<i64: 16, 16>}, {pipeline_mode = #tpu.pipeline_mode<synchronous>, transform_indices = @transform_12, window_bounds = array<i64: 1, 16>}, {pipeline_mode = #tpu.pipeline_mode<synchronous>, transform_indices = @transform_13, window_bounds = array<i64: 16, 16>}, {pipeline_mode = #tpu.pipeline_mode<synchronous>, transform_indices = @transform_14, window_bounds = array<i64: 1, 16>}, {pipeline_mode = #tpu.pipeline_mode<synchronous>, transform_indices = @transform_15, window_bounds = array<i64: 16, 16>}, {pipeline_mode = #tpu.pipeline_mode<synchronous>, transform_indices = @transform_16, window_bounds = array<i64: 1, 16>}, {pipeline_mode = #tpu.pipeline_mode<synchronous>, transform_indices = @transform_17, window_bounds = array<i64: 256, 64>}, {pipeline_mode = #tpu.pipeline_mode<synchronous>, transform_indices = @transform_18, window_bounds = array<i64: 16, 64>}, {pipeline_mode = #tpu.pipeline_mode<synchronous>, transform_indices = @transform_19, window_bounds = array<i64: 64, 64>}, {transform_indices = @transform_20, window_bounds = array<i64: 1, 16, 64>}, {transform_indices = @transform_21, window_bounds = array<i64: 1, 16, 64>}, {transform_indices = @transform_22, window_bounds = array<i64: 1, 16, 16>}]} {
    %c0 = arith.constant 0 : index
    %c0_0 = arith.constant 0 : index
    %0 = vector.load %arg4[%c0, %c0_0] : memref<16x4xf32, #tpu.memory_space<vmem>>, vector<16x4xf32>
    %c0_1 = arith.constant 0 : index
    %c0_2 = arith.constant 0 : index
    %c0_3 = arith.constant 0 : index
    %1 = vector.load %arg1[%c0_1, %c0_2, %c0_3] : memref<1x4x256xf32, #tpu.memory_space<vmem>>, vector<1x4x256xf32>
    %2 = vector.shape_cast %1 : vector<1x4x256xf32> to vector<4x256xf32>
    %cst = arith.constant dense<0.000000e+00> : vector<16x256xf32>
    %3 = tpu.matmul %0, %2, %cst {dimension_numbers = #tpu.dot_dimension_numbers<[1], [0], [0], [1], [0, 0, 1, 1], [], []>} : vector<16x4xf32>, vector<4x256xf32>, vector<16x256xf32> -> vector<16x256xf32>
    %c0_4 = arith.constant 0 : index
    %c0_5 = arith.constant 0 : index
    %4 = vector.load %arg5[%c0_4, %c0_5] : memref<16x1xf32, #tpu.memory_space<vmem>>, vector<16x1xf32>
    %5 = vector.broadcast %4 : vector<16x1xf32> to vector<16x256xf32>
    %6 = arith.addf %3, %5 : vector<16x256xf32>
    %c0_6 = arith.constant 0 : index
    %c0_7 = arith.constant 0 : index
    %7 = vector.load %arg6[%c0_6, %c0_7] : memref<16x4xf32, #tpu.memory_space<vmem>>, vector<16x4xf32>
    %c0_8 = arith.constant 0 : index
    %c0_9 = arith.constant 0 : index
    %c0_10 = arith.constant 0 : index
    %8 = vector.load %arg2[%c0_8, %c0_9, %c0_10] : memref<1x4x64xf32, #tpu.memory_space<vmem>>, vector<1x4x64xf32>
    %9 = vector.shape_cast %8 : vector<1x4x64xf32> to vector<4x64xf32>
    %cst_11 = arith.constant dense<0.000000e+00> : vector<16x64xf32>
    %10 = tpu.matmul %7, %9, %cst_11 {dimension_numbers = #tpu.dot_dimension_numbers<[1], [0], [0], [1], [0, 0, 1, 1], [], []>} : vector<16x4xf32>, vector<4x64xf32>, vector<16x64xf32> -> vector<16x64xf32>
    %c0_12 = arith.constant 0 : index
    %c0_13 = arith.constant 0 : index
    %11 = vector.load %arg7[%c0_12, %c0_13] : memref<16x1xf32, #tpu.memory_space<vmem>>, vector<16x1xf32>
    %12 = vector.broadcast %11 : vector<16x1xf32> to vector<16x64xf32>
    %13 = arith.addf %10, %12 : vector<16x64xf32>
    %c0_14 = arith.constant 0 : index
    %c0_15 = arith.constant 0 : index
    %14 = vector.load %arg8[%c0_14, %c0_15] : memref<16x4xf32, #tpu.memory_space<vmem>>, vector<16x4xf32>
    %c0_16 = arith.constant 0 : index
    %c0_17 = arith.constant 0 : index
    %c0_18 = arith.constant 0 : index
    %15 = vector.load %arg3[%c0_16, %c0_17, %c0_18] : memref<1x4x16xf32, #tpu.memory_space<vmem>>, vector<1x4x16xf32>
    %16 = vector.shape_cast %15 : vector<1x4x16xf32> to vector<4x16xf32>
    %cst_19 = arith.constant dense<0.000000e+00> : vector<16x16xf32>
    %17 = tpu.matmul %14, %16, %cst_19 {dimension_numbers = #tpu.dot_dimension_numbers<[1], [0], [0], [1], [0, 0, 1, 1], [], []>} : vector<16x4xf32>, vector<4x16xf32>, vector<16x16xf32> -> vector<16x16xf32>
    %c0_20 = arith.constant 0 : index
    %c0_21 = arith.constant 0 : index
    %18 = vector.load %arg9[%c0_20, %c0_21] : memref<16x1xf32, #tpu.memory_space<vmem>>, vector<16x1xf32>
    %19 = vector.broadcast %18 : vector<16x1xf32> to vector<16x16xf32>
    %20 = arith.addf %17, %19 : vector<16x16xf32>
    %21 = tpu.transpose %20, [1, 0] : vector<16x16xf32> -> vector<16x16xf32>
    %c0_22 = arith.constant 0 : index
    %c0_23 = arith.constant 0 : index
    %22 = vector.load %arg10[%c0_22, %c0_23] : memref<16x16xf32, #tpu.memory_space<vmem>>, vector<16x16xf32>
    %cst_24 = arith.constant dense<0.000000e+00> : vector<16x16xf32>
    %23 = tpu.matmul %21, %22, %cst_24 {dimension_numbers = #tpu.dot_dimension_numbers<[1], [0], [0], [1], [0, 0, 1, 1], [], []>} : vector<16x16xf32>, vector<16x16xf32>, vector<16x16xf32> -> vector<16x16xf32>
    %c0_25 = arith.constant 0 : index
    %c0_26 = arith.constant 0 : index
    %24 = vector.load %arg11[%c0_25, %c0_26] : memref<1x16xf32, #tpu.memory_space<vmem>>, vector<1x16xf32>
    %25 = vector.broadcast %24 : vector<1x16xf32> to vector<16x16xf32>
    %26 = arith.addf %23, %25 : vector<16x16xf32>
    %c0_27 = arith.constant 0 : index
    %c0_28 = arith.constant 0 : index
    %27 = vector.load %arg12[%c0_27, %c0_28] : memref<16x16xf32, #tpu.memory_space<vmem>>, vector<16x16xf32>
    %cst_29 = arith.constant dense<0.000000e+00> : vector<16x16xf32>
    %28 = tpu.matmul %21, %27, %cst_29 {dimension_numbers = #tpu.dot_dimension_numbers<[1], [0], [0], [1], [0, 0, 1, 1], [], []>} : vector<16x16xf32>, vector<16x16xf32>, vector<16x16xf32> -> vector<16x16xf32>
    %c0_30 = arith.constant 0 : index
    %c0_31 = arith.constant 0 : index
    %29 = vector.load %arg13[%c0_30, %c0_31] : memref<1x16xf32, #tpu.memory_space<vmem>>, vector<1x16xf32>
    %30 = vector.broadcast %29 : vector<1x16xf32> to vector<16x16xf32>
    %31 = arith.addf %28, %30 : vector<16x16xf32>
    %c0_32 = arith.constant 0 : index
    %c0_33 = arith.constant 0 : index
    %32 = vector.load %arg14[%c0_32, %c0_33] : memref<16x16xf32, #tpu.memory_space<vmem>>, vector<16x16xf32>
    %cst_34 = arith.constant dense<0.000000e+00> : vector<16x16xf32>
    %33 = tpu.matmul %21, %32, %cst_34 {dimension_numbers = #tpu.dot_dimension_numbers<[1], [0], [0], [1], [0, 0, 1, 1], [], []>} : vector<16x16xf32>, vector<16x16xf32>, vector<16x16xf32> -> vector<16x16xf32>
    %c0_35 = arith.constant 0 : index
    %c0_36 = arith.constant 0 : index
    %34 = vector.load %arg15[%c0_35, %c0_36] : memref<1x16xf32, #tpu.memory_space<vmem>>, vector<1x16xf32>
    %35 = vector.broadcast %34 : vector<1x16xf32> to vector<16x16xf32>
    %36 = arith.addf %33, %35 : vector<16x16xf32>
    %37 = vector.extract_strided_slice %26 {offsets = [0, 0], sizes = [16, 4], strides = [1, 1]} : vector<16x16xf32> to vector<16x4xf32>
    %38 = vector.extract_strided_slice %31 {offsets = [0, 0], sizes = [16, 4], strides = [1, 1]} : vector<16x16xf32> to vector<16x4xf32>
    %39 = vector.extract_strided_slice %36 {offsets = [0, 0], sizes = [16, 4], strides = [1, 1]} : vector<16x16xf32> to vector<16x4xf32>
    %cst_37 = arith.constant 5.000000e-01 : f32
    %40 = vector.broadcast %cst_37 : f32 to vector<16x4xf32>
    %41 = arith.mulf %37, %40 : vector<16x4xf32>
    "tpu.trace_start"() <{level = 10 : i32, message = "ld,md->lm"}> : () -> ()
    %cst_38 = arith.constant dense<0.000000e+00> : vector<16x16xf32>
    %42 = tpu.matmul %41, %38, %cst_38 {dimension_numbers = #tpu.dot_dimension_numbers<[1], [1], [0], [0], [0, 0, 1, 0], [], []>} : vector<16x4xf32>, vector<16x4xf32>, vector<16x16xf32> -> vector<16x16xf32>
    "tpu.trace_stop"() : () -> ()
    %cst_39 = arith.constant dense<0xFF800000> : vector<16xf32>
    %43 = vector.multi_reduction <maximumf>, %42, %cst_39 [1] : vector<16x16xf32> to vector<16xf32>
    %44 = vector.shape_cast %43 : vector<16xf32> to vector<16x1xf32>
    %45 = vector.broadcast %44 : vector<16x1xf32> to vector<16x16xf32>
    %46 = arith.subf %42, %45 : vector<16x16xf32>
    %47 = math.exp %46 : vector<16x16xf32>
    %cst_40 = arith.constant dense<0.000000e+00> : vector<16xf32>
    %48 = vector.multi_reduction <add>, %47, %cst_40 [1] : vector<16x16xf32> to vector<16xf32>
    %49 = vector.shape_cast %48 : vector<16xf32> to vector<16x1xf32>
    %50 = vector.broadcast %49 : vector<16x1xf32> to vector<16x16xf32>
    %51 = arith.divf %47, %50 : vector<16x16xf32>
    %cst_41 = arith.constant dense<0.000000e+00> : vector<16x4xf32>
    %52 = tpu.matmul %51, %39, %cst_41 {dimension_numbers = #tpu.dot_dimension_numbers<[1], [0], [0], [1], [0, 0, 1, 1], [], []>} : vector<16x16xf32>, vector<16x4xf32>, vector<16x4xf32> -> vector<16x4xf32>
    %53 = vector.extract_strided_slice %26 {offsets = [0, 4], sizes = [16, 4], strides = [1, 1]} : vector<16x16xf32> to vector<16x4xf32>
    %54 = vector.extract_strided_slice %31 {offsets = [0, 4], sizes = [16, 4], strides = [1, 1]} : vector<16x16xf32> to vector<16x4xf32>
    %55 = vector.extract_strided_slice %36 {offsets = [0, 4], sizes = [16, 4], strides = [1, 1]} : vector<16x16xf32> to vector<16x4xf32>
    %cst_42 = arith.constant 5.000000e-01 : f32
    %56 = vector.broadcast %cst_42 : f32 to vector<16x4xf32>
    %57 = arith.mulf %53, %56 : vector<16x4xf32>
    "tpu.trace_start"() <{level = 10 : i32, message = "ld,md->lm"}> : () -> ()
    %cst_43 = arith.constant dense<0.000000e+00> : vector<16x16xf32>
    %58 = tpu.matmul %57, %54, %cst_43 {dimension_numbers = #tpu.dot_dimension_numbers<[1], [1], [0], [0], [0, 0, 1, 0], [], []>} : vector<16x4xf32>, vector<16x4xf32>, vector<16x16xf32> -> vector<16x16xf32>
    "tpu.trace_stop"() : () -> ()
    %cst_44 = arith.constant dense<0xFF800000> : vector<16xf32>
    %59 = vector.multi_reduction <maximumf>, %58, %cst_44 [1] : vector<16x16xf32> to vector<16xf32>
    %60 = vector.shape_cast %59 : vector<16xf32> to vector<16x1xf32>
    %61 = vector.broadcast %60 : vector<16x1xf32> to vector<16x16xf32>
    %62 = arith.subf %58, %61 : vector<16x16xf32>
    %63 = math.exp %62 : vector<16x16xf32>
    %cst_45 = arith.constant dense<0.000000e+00> : vector<16xf32>
    %64 = vector.multi_reduction <add>, %63, %cst_45 [1] : vector<16x16xf32> to vector<16xf32>
    %65 = vector.shape_cast %64 : vector<16xf32> to vector<16x1xf32>
    %66 = vector.broadcast %65 : vector<16x1xf32> to vector<16x16xf32>
    %67 = arith.divf %63, %66 : vector<16x16xf32>
    %cst_46 = arith.constant dense<0.000000e+00> : vector<16x4xf32>
    %68 = tpu.matmul %67, %55, %cst_46 {dimension_numbers = #tpu.dot_dimension_numbers<[1], [0], [0], [1], [0, 0, 1, 1], [], []>} : vector<16x16xf32>, vector<16x4xf32>, vector<16x4xf32> -> vector<16x4xf32>
    %69 = vector.extract_strided_slice %26 {offsets = [0, 8], sizes = [16, 4], strides = [1, 1]} : vector<16x16xf32> to vector<16x4xf32>
    %70 = vector.extract_strided_slice %31 {offsets = [0, 8], sizes = [16, 4], strides = [1, 1]} : vector<16x16xf32> to vector<16x4xf32>
    %71 = vector.extract_strided_slice %36 {offsets = [0, 8], sizes = [16, 4], strides = [1, 1]} : vector<16x16xf32> to vector<16x4xf32>
    %cst_47 = arith.constant 5.000000e-01 : f32
    %72 = vector.broadcast %cst_47 : f32 to vector<16x4xf32>
    %73 = arith.mulf %69, %72 : vector<16x4xf32>
    "tpu.trace_start"() <{level = 10 : i32, message = "ld,md->lm"}> : () -> ()
    %cst_48 = arith.constant dense<0.000000e+00> : vector<16x16xf32>
    %74 = tpu.matmul %73, %70, %cst_48 {dimension_numbers = #tpu.dot_dimension_numbers<[1], [1], [0], [0], [0, 0, 1, 0], [], []>} : vector<16x4xf32>, vector<16x4xf32>, vector<16x16xf32> -> vector<16x16xf32>
    "tpu.trace_stop"() : () -> ()
    %cst_49 = arith.constant dense<0xFF800000> : vector<16xf32>
    %75 = vector.multi_reduction <maximumf>, %74, %cst_49 [1] : vector<16x16xf32> to vector<16xf32>
    %76 = vector.shape_cast %75 : vector<16xf32> to vector<16x1xf32>
    %77 = vector.broadcast %76 : vector<16x1xf32> to vector<16x16xf32>
    %78 = arith.subf %74, %77 : vector<16x16xf32>
    %79 = math.exp %78 : vector<16x16xf32>
    %cst_50 = arith.constant dense<0.000000e+00> : vector<16xf32>
    %80 = vector.multi_reduction <add>, %79, %cst_50 [1] : vector<16x16xf32> to vector<16xf32>
    %81 = vector.shape_cast %80 : vector<16xf32> to vector<16x1xf32>
    %82 = vector.broadcast %81 : vector<16x1xf32> to vector<16x16xf32>
    %83 = arith.divf %79, %82 : vector<16x16xf32>
    %cst_51 = arith.constant dense<0.000000e+00> : vector<16x4xf32>
    %84 = tpu.matmul %83, %71, %cst_51 {dimension_numbers = #tpu.dot_dimension_numbers<[1], [0], [0], [1], [0, 0, 1, 1], [], []>} : vector<16x16xf32>, vector<16x4xf32>, vector<16x4xf32> -> vector<16x4xf32>
    %85 = vector.extract_strided_slice %26 {offsets = [0, 12], sizes = [16, 4], strides = [1, 1]} : vector<16x16xf32> to vector<16x4xf32>
    %86 = vector.extract_strided_slice %31 {offsets = [0, 12], sizes = [16, 4], strides = [1, 1]} : vector<16x16xf32> to vector<16x4xf32>
    %87 = vector.extract_strided_slice %36 {offsets = [0, 12], sizes = [16, 4], strides = [1, 1]} : vector<16x16xf32> to vector<16x4xf32>
    %cst_52 = arith.constant 5.000000e-01 : f32
    %88 = vector.broadcast %cst_52 : f32 to vector<16x4xf32>
    %89 = arith.mulf %85, %88 : vector<16x4xf32>
    "tpu.trace_start"() <{level = 10 : i32, message = "ld,md->lm"}> : () -> ()
    %cst_53 = arith.constant dense<0.000000e+00> : vector<16x16xf32>
    %90 = tpu.matmul %89, %86, %cst_53 {dimension_numbers = #tpu.dot_dimension_numbers<[1], [1], [0], [0], [0, 0, 1, 0], [], []>} : vector<16x4xf32>, vector<16x4xf32>, vector<16x16xf32> -> vector<16x16xf32>
    "tpu.trace_stop"() : () -> ()
    %cst_54 = arith.constant dense<0xFF800000> : vector<16xf32>
    %91 = vector.multi_reduction <maximumf>, %90, %cst_54 [1] : vector<16x16xf32> to vector<16xf32>
    %92 = vector.shape_cast %91 : vector<16xf32> to vector<16x1xf32>
    %93 = vector.broadcast %92 : vector<16x1xf32> to vector<16x16xf32>
    %94 = arith.subf %90, %93 : vector<16x16xf32>
    %95 = math.exp %94 : vector<16x16xf32>
    %cst_55 = arith.constant dense<0.000000e+00> : vector<16xf32>
    %96 = vector.multi_reduction <add>, %95, %cst_55 [1] : vector<16x16xf32> to vector<16xf32>
    %97 = vector.shape_cast %96 : vector<16xf32> to vector<16x1xf32>
    %98 = vector.broadcast %97 : vector<16x1xf32> to vector<16x16xf32>
    %99 = arith.divf %95, %98 : vector<16x16xf32>
    %cst_56 = arith.constant dense<0.000000e+00> : vector<16x4xf32>
    %100 = tpu.matmul %99, %87, %cst_56 {dimension_numbers = #tpu.dot_dimension_numbers<[1], [0], [0], [1], [0, 0, 1, 1], [], []>} : vector<16x16xf32>, vector<16x4xf32>, vector<16x4xf32> -> vector<16x4xf32>
    %101 = tpu.concatenate %52, %68, %84, %100 in 1 : vector<16x4xf32>, vector<16x4xf32>, vector<16x4xf32>, vector<16x4xf32> -> vector<16x16xf32>
    %c0_57 = arith.constant 0 : index
    %c0_58 = arith.constant 0 : index
    %102 = vector.load %arg16[%c0_57, %c0_58] : memref<16x16xf32, #tpu.memory_space<vmem>>, vector<16x16xf32>
    %cst_59 = arith.constant dense<0.000000e+00> : vector<16x16xf32>
    %103 = tpu.matmul %101, %102, %cst_59 {dimension_numbers = #tpu.dot_dimension_numbers<[1], [0], [0], [1], [0, 0, 1, 1], [], []>} : vector<16x16xf32>, vector<16x16xf32>, vector<16x16xf32> -> vector<16x16xf32>
    %c0_60 = arith.constant 0 : index
    %c0_61 = arith.constant 0 : index
    %104 = vector.load %arg17[%c0_60, %c0_61] : memref<1x16xf32, #tpu.memory_space<vmem>>, vector<1x16xf32>
    %105 = vector.broadcast %104 : vector<1x16xf32> to vector<16x16xf32>
    %106 = arith.addf %103, %105 : vector<16x16xf32>
    %107 = tpu.transpose %106, [1, 0] : vector<16x16xf32> -> vector<16x16xf32>
    %c0_62 = arith.constant 0 : index
    %c0_63 = arith.constant 0 : index
    %c0_64 = arith.constant 0 : index
    %108 = vector.load %arg23[%c0_62, %c0_63, %c0_64] : memref<1x16x16xf32, #tpu.memory_space<vmem>>, vector<1x16x16xf32>
    %109 = vector.shape_cast %108 : vector<1x16x16xf32> to vector<16x16xf32>
    %110 = vector.shape_cast %107 : vector<16x16xf32> to vector<1x16x16xf32>
    tpu.vector_store %arg23[%c0_62, %c0_63, %c0_64], %110 {strides = array<i32>} : memref<1x16x16xf32, #tpu.memory_space<vmem>>, vector<1x16x16xf32>,
    %c0_65 = arith.constant 0 : index
    %c0_66 = arith.constant 0 : index
    %111 = vector.load %arg18[%c0_65, %c0_66] : memref<256x64xf32, #tpu.memory_space<vmem>>, vector<256x64xf32>
    %cst_67 = arith.constant dense<0.000000e+00> : vector<16x64xf32>
    %112 = tpu.matmul %6, %111, %cst_67 {dimension_numbers = #tpu.dot_dimension_numbers<[1], [0], [0], [1], [0, 0, 1, 1], [], []>} : vector<16x256xf32>, vector<256x64xf32>, vector<16x64xf32> -> vector<16x64xf32>
    %c0_68 = arith.constant 0 : index
    %c0_69 = arith.constant 0 : index
    %113 = vector.load %arg19[%c0_68, %c0_69] : memref<16x64xf32, #tpu.memory_space<vmem>>, vector<16x64xf32>
    %cst_70 = arith.constant dense<0.000000e+00> : vector<16x64xf32>
    %114 = tpu.matmul %107, %113, %cst_70 {dimension_numbers = #tpu.dot_dimension_numbers<[1], [0], [0], [1], [0, 0, 1, 1], [], []>} : vector<16x16xf32>, vector<16x64xf32>, vector<16x64xf32> -> vector<16x64xf32>
    %115 = arith.addf %13, %114 : vector<16x64xf32>
    %c0_71 = arith.constant 0 : index
    %c0_72 = arith.constant 0 : index
    %c0_73 = arith.constant 0 : index
    %116 = vector.load %arg22[%c0_71, %c0_72, %c0_73] : memref<1x16x64xf32, #tpu.memory_space<vmem>>, vector<1x16x64xf32>
    %117 = vector.shape_cast %116 : vector<1x16x64xf32> to vector<16x64xf32>
    %118 = vector.shape_cast %115 : vector<16x64xf32> to vector<1x16x64xf32>
    tpu.vector_store %arg22[%c0_71, %c0_72, %c0_73], %118 {strides = array<i32>} : memref<1x16x64xf32, #tpu.memory_space<vmem>>, vector<1x16x64xf32>,
    %c0_74 = arith.constant 0 : index
    %c0_75 = arith.constant 0 : index
    %119 = vector.load %arg20[%c0_74, %c0_75] : memref<64x64xf32, #tpu.memory_space<vmem>>, vector<64x64xf32>
    %cst_76 = arith.constant dense<0.000000e+00> : vector<16x64xf32>
    %120 = tpu.matmul %115, %119, %cst_76 {dimension_numbers = #tpu.dot_dimension_numbers<[1], [0], [0], [1], [0, 0, 1, 1], [], []>} : vector<16x64xf32>, vector<64x64xf32>, vector<16x64xf32> -> vector<16x64xf32>
    %121 = arith.addf %112, %120 : vector<16x64xf32>
    %c0_77 = arith.constant 0 : index
    %c0_78 = arith.constant 0 : index
    %c0_79 = arith.constant 0 : index
    %122 = vector.load %arg21[%c0_77, %c0_78, %c0_79] : memref<1x16x64xf32, #tpu.memory_space<vmem>>, vector<1x16x64xf32>
    %123 = vector.shape_cast %122 : vector<1x16x64xf32> to vector<16x64xf32>
    %124 = vector.shape_cast %121 : vector<16x64xf32> to vector<1x16x64xf32>
    tpu.vector_store %arg21[%c0_77, %c0_78, %c0_79], %124 {strides = array<i32>} : memref<1x16x64xf32, #tpu.memory_space<vmem>>, vector<1x16x64xf32>,
    return
  }
  func.func @transform_0(%arg0: i32) -> (i32, i32, i32) {
    %c0_i32 = arith.constant 0 : i32
    %c0_i32_0 = arith.constant 0 : i32
    %c0_i32_1 = arith.constant 0 : i32
    return %arg0, %c0_i32, %c0_i32_0 : i32, i32, i32
  }
  func.func @transform_1(%arg0: i32) -> (i32, i32, i32) {
    %c0_i32 = arith.constant 0 : i32
    %c0_i32_0 = arith.constant 0 : i32
    %c0_i32_1 = arith.constant 0 : i32
    return %arg0, %c0_i32, %c0_i32_0 : i32, i32, i32
  }
  func.func @transform_2(%arg0: i32) -> (i32, i32, i32) {
    %c0_i32 = arith.constant 0 : i32
    %c0_i32_0 = arith.constant 0 : i32
    %c0_i32_1 = arith.constant 0 : i32
    return %arg0, %c0_i32, %c0_i32_0 : i32, i32, i32
  }
  func.func @transform_3(%arg0: i32) -> (i32, i32) {
    %c0_i32 = arith.constant 0 : i32
    %c0_i32_0 = arith.constant 0 : i32
    %c0_i32_1 = arith.constant 0 : i32
    return %c0_i32, %c0_i32_0 : i32, i32
  }
  func.func @transform_4(%arg0: i32) -> (i32, i32) {
    %c0_i32 = arith.constant 0 : i32
    %c0_i32_0 = arith.constant 0 : i32
    %c0_i32_1 = arith.constant 0 : i32
    return %c0_i32, %c0_i32_0 : i32, i32
  }
  func.func @transform_5(%arg0: i32) -> (i32, i32) {
    %c0_i32 = arith.constant 0 : i32
    %c0_i32_0 = arith.constant 0 : i32
    %c0_i32_1 = arith.constant 0 : i32
    return %c0_i32, %c0_i32_0 : i32, i32
  }
  func.func @transform_6(%arg0: i32) -> (i32, i32) {
    %c0_i32 = arith.constant 0 : i32
    %c0_i32_0 = arith.constant 0 : i32
    %c0_i32_1 = arith.constant 0 : i32
    return %c0_i32, %c0_i32_0 : i32, i32
  }
  func.func @transform_7(%arg0: i32) -> (i32, i32) {
    %c0_i32 = arith.constant 0 : i32
    %c0_i32_0 = arith.constant 0 : i32
    %c0_i32_1 = arith.constant 0 : i32
    return %c0_i32, %c0_i32_0 : i32, i32
  }
  func.func @transform_8(%arg0: i32) -> (i32, i32) {
    %c0_i32 = arith.constant 0 : i32
    %c0_i32_0 = arith.constant 0 : i32
    %c0_i32_1 = arith.constant 0 : i32
    return %c0_i32, %c0_i32_0 : i32, i32
  }
  func.func @transform_9(%arg0: i32) -> (i32, i32) {
    %c0_i32 = arith.constant 0 : i32
    %c0_i32_0 = arith.constant 0 : i32
    %c0_i32_1 = arith.constant 0 : i32
    return %c0_i32, %c0_i32_0 : i32, i32
  }
  func.func @transform_10(%arg0: i32) -> (i32, i32) {
    %c0_i32 = arith.constant 0 : i32
    %c0_i32_0 = arith.constant 0 : i32
    %c0_i32_1 = arith.constant 0 : i32
    return %c0_i32, %c0_i32_0 : i32, i32
  }
  func.func @transform_11(%arg0: i32) -> (i32, i32) {
    %c0_i32 = arith.constant 0 : i32
    %c0_i32_0 = arith.constant 0 : i32
    %c0_i32_1 = arith.constant 0 : i32
    return %c0_i32, %c0_i32_0 : i32, i32
  }
  func.func @transform_12(%arg0: i32) -> (i32, i32) {
    %c0_i32 = arith.constant 0 : i32
    %c0_i32_0 = arith.constant 0 : i32
    %c0_i32_1 = arith.constant 0 : i32
    return %c0_i32, %c0_i32_0 : i32, i32
  }
  func.func @transform_13(%arg0: i32) -> (i32, i32) {
    %c0_i32 = arith.constant 0 : i32
    %c0_i32_0 = arith.constant 0 : i32
    %c0_i32_1 = arith.constant 0 : i32
    return %c0_i32, %c0_i32_0 : i32, i32
  }
  func.func @transform_14(%arg0: i32) -> (i32, i32) {
    %c0_i32 = arith.constant 0 : i32
    %c0_i32_0 = arith.constant 0 : i32
    %c0_i32_1 = arith.constant 0 : i32
    return %c0_i32, %c0_i32_0 : i32, i32
  }
  func.func @transform_15(%arg0: i32) -> (i32, i32) {
    %c0_i32 = arith.constant 0 : i32
    %c0_i32_0 = arith.constant 0 : i32
    %c0_i32_1 = arith.constant 0 : i32
    return %c0_i32, %c0_i32_0 : i32, i32
  }
  func.func @transform_16(%arg0: i32) -> (i32, i32) {
    %c0_i32 = arith.constant 0 : i32
    %c0_i32_0 = arith.constant 0 : i32
    %c0_i32_1 = arith.constant 0 : i32
    return %c0_i32, %c0_i32_0 : i32, i32
  }
  func.func @transform_17(%arg0: i32) -> (i32, i32) {
    %c0_i32 = arith.constant 0 : i32
    %c0_i32_0 = arith.constant 0 : i32
    %c0_i32_1 = arith.constant 0 : i32
    return %c0_i32, %c0_i32_0 : i32, i32
  }
  func.func @transform_18(%arg0: i32) -> (i32, i32) {
    %c0_i32 = arith.constant 0 : i32
    %c0_i32_0 = arith.constant 0 : i32
    %c0_i32_1 = arith.constant 0 : i32
    return %c0_i32, %c0_i32_0 : i32, i32
  }
  func.func @transform_19(%arg0: i32) -> (i32, i32) {
    %c0_i32 = arith.constant 0 : i32
    %c0_i32_0 = arith.constant 0 : i32
    %c0_i32_1 = arith.constant 0 : i32
    return %c0_i32, %c0_i32_0 : i32, i32
  }
  func.func @transform_20(%arg0: i32) -> (i32, i32, i32) {
    %c0_i32 = arith.constant 0 : i32
    %c0_i32_0 = arith.constant 0 : i32
    %c0_i32_1 = arith.constant 0 : i32
    return %arg0, %c0_i32, %c0_i32_0 : i32, i32, i32
  }
  func.func @transform_21(%arg0: i32) -> (i32, i32, i32) {
    %c0_i32 = arith.constant 0 : i32
    %c0_i32_0 = arith.constant 0 : i32
    %c0_i32_1 = arith.constant 0 : i32
    return %arg0, %c0_i32, %c0_i32_0 : i32, i32, i32
  }
  func.func @transform_22(%arg0: i32) -> (i32, i32, i32) {
    %c0_i32 = arith.constant 0 : i32
    %c0_i32_0 = arith.constant 0 : i32
    %c0_i32_1 = arith.constant 0 : i32
    return %arg0, %c0_i32, %c0_i32_0 : i32, i32, i32
  }
}

</mosaic_0001>

<llo_original>
// kernel: bifpn_forward.1
$region0: #{bifpn_forward.1}
  #allocation0 [shape = 'u32[]', space=smem, size = 0x4, offset = 0x4, fixed_abs, tag = 'smem constant byte address 0x4 - core index']
  #allocation1 [shape = 'u32[144,128]{1,0:T(1,128)}', space=vmem, size = 0x12000, scoped, tag = 'internal scratch']
  %s0 = inlined_call_operand.vmem [shape: f32[2,4,256], index: 0, kind: input, shape index: {}]
  %s1 = inlined_call_operand.vmem [shape: f32[2,4,64], index: 1, kind: input, shape index: {}]
  %s2 = inlined_call_operand.vmem [shape: f32[2,4,16], index: 2, kind: input, shape index: {}]
  %s3 = inlined_call_operand.vmem [shape: f32[16,4], index: 3, kind: input, shape index: {}]
  %s4 = inlined_call_operand.vmem [shape: f32[16,1], index: 4, kind: input, shape index: {}]
  %s5 = inlined_call_operand.vmem [shape: f32[16,4], index: 5, kind: input, shape index: {}]
  %s6 = inlined_call_operand.vmem [shape: f32[16,1], index: 6, kind: input, shape index: {}]
  %s7 = inlined_call_operand.vmem [shape: f32[16,4], index: 7, kind: input, shape index: {}]
  %s8 = inlined_call_operand.vmem [shape: f32[16,1], index: 8, kind: input, shape index: {}]
  %s9 = inlined_call_operand.vmem [shape: f32[16,16], index: 9, kind: input, shape index: {}]
  %s10 = inlined_call_operand.vmem [shape: f32[1,16], index: 10, kind: input, shape index: {}]
  %s11 = inlined_call_operand.vmem [shape: f32[16,16], index: 11, kind: input, shape index: {}]
  %s12 = inlined_call_operand.vmem [shape: f32[1,16], index: 12, kind: input, shape index: {}]
  %s13 = inlined_call_operand.vmem [shape: f32[16,16], index: 13, kind: input, shape index: {}]
  %s14 = inlined_call_operand.vmem [shape: f32[1,16], index: 14, kind: input, shape index: {}]
  %s15 = inlined_call_operand.vmem [shape: f32[16,16], index: 15, kind: input, shape index: {}]
  %s16 = inlined_call_operand.vmem [shape: f32[1,16], index: 16, kind: input, shape index: {}]
  %s17 = inlined_call_operand.vmem [shape: f32[256,64], index: 17, kind: input, shape index: {}]
  %s18 = inlined_call_operand.vmem [shape: f32[16,64], index: 18, kind: input, shape index: {}]
  %s19 = inlined_call_operand.vmem [shape: f32[64,64], index: 19, kind: input, shape index: {}]
  %s20 = inlined_call_operand.vmem [shape: f32[2,16,64], index: 20, kind: output, shape index: {0}]
  %s21 = inlined_call_operand.vmem [shape: f32[2,16,64], index: 21, kind: output, shape index: {1}]
  %s22 = inlined_call_operand.vmem [shape: f32[2,16,16], index: 22, kind: output, shape index: {2}]
  %23 = xla_tuple %s20, %s21, %s22
  %s24 = sld [smem:[#allocation0]]
  $region129: #{bifpn_forward.1} parent=0
    _
  %s26 = ssub.s32 1, %s24
  %s27 = scalar_select 0, %s26, %s24
  loop: start=0, step=1, limit=4
  $region2: #{bifpn_forward.1} parent=0 // loop_pre_header
    _
  $region3: #{bifpn_forward.1} parent=0 // loop_header
    %s29 = sphi 0, %s33
    %p30 = scmp.ge.s32.totalorder %s29, 4
    %s39 = sphi 0, %s41
    %s42 = sphi 0, %s39
    %s43 = sphi 0, %s42
    %s59 = sphi 0, %s43
    %s65 = sphi 0, %s67
    %s68 = sphi 0, %s65
    %s69 = sphi 0, %s68
    %s85 = sphi 0, %s69
    %s91 = sphi 0, %s93
    %s94 = sphi 0, %s91
    %s95 = sphi 0, %s94
    %s111 = sphi 0, %s95
    %s115 = sphi 0, %s115
    %s117 = sphi 0, %s115
    %s118 = sphi 0, %s117
    %s132 = sphi 0, %s118
    %s136 = sphi 0, %s136
    %s138 = sphi 0, %s136
    %s139 = sphi 0, %s138
    %s153 = sphi 0, %s139
    %s157 = sphi 0, %s157
    %s159 = sphi 0, %s157
    %s160 = sphi 0, %s159
    %s174 = sphi 0, %s160
    %s178 = sphi 0, %s178
    %s180 = sphi 0, %s178
    %s181 = sphi 0, %s180
    %s195 = sphi 0, %s181
    %s199 = sphi 0, %s199
    %s201 = sphi 0, %s199
    %s202 = sphi 0, %s201
    %s216 = sphi 0, %s202
    %s220 = sphi 0, %s220
    %s222 = sphi 0, %s220
    %s223 = sphi 0, %s222
    %s237 = sphi 0, %s223
    %s241 = sphi 0, %s241
    %s243 = sphi 0, %s241
    %s244 = sphi 0, %s243
    %s258 = sphi 0, %s244
    %s262 = sphi 0, %s262
    %s264 = sphi 0, %s262
    %s265 = sphi 0, %s264
    %s279 = sphi 0, %s265
    %s283 = sphi 0, %s283
    %s285 = sphi 0, %s283
    %s286 = sphi 0, %s285
    %s300 = sphi 0, %s286
    %s304 = sphi 0, %s304
    %s306 = sphi 0, %s304
    %s307 = sphi 0, %s306
    %s321 = sphi 0, %s307
    %s325 = sphi 0, %s325
    %s327 = sphi 0, %s325
    %s328 = sphi 0, %s327
    %s342 = sphi 0, %s328
    %s346 = sphi 0, %s346
    %s348 = sphi 0, %s346
    %s349 = sphi 0, %s348
    %s363 = sphi 0, %s349
    %s367 = sphi 0, %s367
    %s369 = sphi 0, %s367
    %s370 = sphi 0, %s369
    %s384 = sphi 0, %s370
    %s388 = sphi 0, %s388
    %s390 = sphi 0, %s388
    %s391 = sphi 0, %s390
    %s405 = sphi 0, %s391
    %s409 = sphi 0, %s409
    %s411 = sphi 0, %s409
    %s412 = sphi 0, %s411
    %s426 = sphi 0, %s412
    %s430 = sphi 0, %s430
    %s432 = sphi 0, %s430
    %s433 = sphi 0, %s432
    %s447 = sphi 0, %s433
    %s451 = sphi 0, %s451
    %s453 = sphi 0, %s451
    %s454 = sphi 0, %s453
    %s468 = sphi 0, %s454
    %s474 = sphi 0, %s476
    %s477 = sphi 0, %s474
    %s478 = sphi 0, %s477
    %s494 = sphi 0, %s478
    %s500 = sphi 0, %s502
    %s503 = sphi 0, %s500
    %s504 = sphi 0, %s503
    %s520 = sphi 0, %s504
    %s526 = sphi 0, %s528
    %s529 = sphi 0, %s526
    %s530 = sphi 0, %s529
    %s546 = sphi 0, %s530
  $region4: #{bifpn_forward.1} parent=0 // loop_header_branch
    %32 = sbr.rel (%p30) target = $region8
  $region5: #{bifpn_forward.1} parent=0 // loop_body
    %s34 = ssub.s32 %s29, 1
    %s35 = ssub.s32 %s29, 2
    %s36 = sadd.s32 %s29, 1
    %s37 = ssub.s32 %s29, %s36
    %p38 = scmp.eq.s32.totalorder %s37, 0
    %s40 = sadd.s32 %s39, 1
    %s41 = scalar_select %p38, %s39, %s40
    %p44 = pneg %p38
    %p45 = scmp.eq.s32.totalorder %s29, 1
    %p46 = por %p44, %p45
    %p47 = scmp.ne.s32.totalorder %s39, %s42
    %p48 = scmp.eq.s32.totalorder %s29, 0
    %p49 = por %p47, %p48
    %p50 = scmp.ne.s32.totalorder %s39, %s42
    %p51 = scmp.eq.s32.totalorder %s34, 1
    %p52 = por %p50, %p51
    %p53 = scmp.ne.s32.totalorder %s42, %s43
    %p54 = scmp.eq.s32.totalorder %s34, 0
    %p55 = por %p53, %p54
    %p56 = scmp.ne.s32.totalorder %s42, %s43
    %p57 = scmp.eq.s32.totalorder %s35, 1
    %p58 = por %p56, %p57
    %p60 = scmp.ne.s32.totalorder %s43, %s59
    %p61 = scmp.eq.s32.totalorder %s35, 0
    %p62 = por %p60, %p61
    %s63 = ssub.s32 %s29, %s36
    %p64 = scmp.eq.s32.totalorder %s63, 0
    %s66 = sadd.s32 %s65, 1
    %s67 = scalar_select %p64, %s65, %s66
    %p70 = pneg %p64
    %p71 = scmp.eq.s32.totalorder %s29, 1
    %p72 = por %p70, %p71
    %p73 = scmp.ne.s32.totalorder %s65, %s68
    %p74 = scmp.eq.s32.totalorder %s29, 0
    %p75 = por %p73, %p74
    %p76 = scmp.ne.s32.totalorder %s65, %s68
    %p77 = scmp.eq.s32.totalorder %s34, 1
    %p78 = por %p76, %p77
    %p79 = scmp.ne.s32.totalorder %s68, %s69
    %p80 = scmp.eq.s32.totalorder %s34, 0
    %p81 = por %p79, %p80
    %p82 = scmp.ne.s32.totalorder %s68, %s69
    %p83 = scmp.eq.s32.totalorder %s35, 1
    %p84 = por %p82, %p83
    %p86 = scmp.ne.s32.totalorder %s69, %s85
    %p87 = scmp.eq.s32.totalorder %s35, 0
    %p88 = por %p86, %p87
    %s89 = ssub.s32 %s29, %s36
    %p90 = scmp.eq.s32.totalorder %s89, 0
    %s92 = sadd.s32 %s91, 1
    %s93 = scalar_select %p90, %s91, %s92
    %p96 = pneg %p90
    %p97 = scmp.eq.s32.totalorder %s29, 1
    %p98 = por %p96, %p97
    %p99 = scmp.ne.s32.totalorder %s91, %s94
    %p100 = scmp.eq.s32.totalorder %s29, 0
    %p101 = por %p99, %p100
    %p102 = scmp.ne.s32.totalorder %s91, %s94
    %p103 = scmp.eq.s32.totalorder %s34, 1
    %p104 = por %p102, %p103
    %p105 = scmp.ne.s32.totalorder %s94, %s95
    %p106 = scmp.eq.s32.totalorder %s34, 0
    %p107 = por %p105, %p106
    %p108 = scmp.ne.s32.totalorder %s94, %s95
    %p109 = scmp.eq.s32.totalorder %s35, 1
    %p110 = por %p108, %p109
    %p112 = scmp.ne.s32.totalorder %s95, %s111
    %p113 = scmp.eq.s32.totalorder %s35, 0
    %p114 = por %p112, %p113
    %s116 = sadd.s32 %s115, 1
    %p119 = scmp.eq.s32.totalorder %s29, 1
    %p120 = scmp.ne.s32.totalorder %s115, %s117
    %p121 = scmp.eq.s32.totalorder %s29, 0
    %p122 = por %p120, %p121
    %p123 = scmp.ne.s32.totalorder %s115, %s117
    %p124 = scmp.eq.s32.totalorder %s34, 1
    %p125 = por %p123, %p124
    %p126 = scmp.ne.s32.totalorder %s117, %s118
    %p127 = scmp.eq.s32.totalorder %s34, 0
    %p128 = por %p126, %p127
    %p129 = scmp.ne.s32.totalorder %s117, %s118
    %p130 = scmp.eq.s32.totalorder %s35, 1
    %p131 = por %p129, %p130
    %p133 = scmp.ne.s32.totalorder %s118, %s132
    %p134 = scmp.eq.s32.totalorder %s35, 0
    %p135 = por %p133, %p134
    %s137 = sadd.s32 %s136, 1
    %p140 = scmp.eq.s32.totalorder %s29, 1
    %p141 = scmp.ne.s32.totalorder %s136, %s138
    %p142 = scmp.eq.s32.totalorder %s29, 0
    %p143 = por %p141, %p142
    %p144 = scmp.ne.s32.totalorder %s136, %s138
    %p145 = scmp.eq.s32.totalorder %s34, 1
    %p146 = por %p144, %p145
    %p147 = scmp.ne.s32.totalorder %s138, %s139
    %p148 = scmp.eq.s32.totalorder %s34, 0
    %p149 = por %p147, %p148
    %p150 = scmp.ne.s32.totalorder %s138, %s139
    %p151 = scmp.eq.s32.totalorder %s35, 1
    %p152 = por %p150, %p151
    %p154 = scmp.ne.s32.totalorder %s139, %s153
    %p155 = scmp.eq.s32.totalorder %s35, 0
    %p156 = por %p154, %p155
    %s158 = sadd.s32 %s157, 1
    %p161 = scmp.eq.s32.totalorder %s29, 1
    %p162 = scmp.ne.s32.totalorder %s157, %s159
    %p163 = scmp.eq.s32.totalorder %s29, 0
    %p164 = por %p162, %p163
    %p165 = scmp.ne.s32.totalorder %s157, %s159
    %p166 = scmp.eq.s32.totalorder %s34, 1
    %p167 = por %p165, %p166
    %p168 = scmp.ne.s32.totalorder %s159, %s160
    %p169 = scmp.eq.s32.totalorder %s34, 0
    %p170 = por %p168, %p169
    %p171 = scmp.ne.s32.totalorder %s159, %s160
    %p172 = scmp.eq.s32.totalorder %s35, 1
    %p173 = por %p171, %p172
    %p175 = scmp.ne.s32.totalorder %s160, %s174
    %p176 = scmp.eq.s32.totalorder %s35, 0
    %p177 = por %p175, %p176
    %s179 = sadd.s32 %s178, 1
    %p182 = scmp.eq.s32.totalorder %s29, 1
    %p183 = scmp.ne.s32.totalorder %s178, %s180
    %p184 = scmp.eq.s32.totalorder %s29, 0
    %p185 = por %p183, %p184
    %p186 = scmp.ne.s32.totalorder %s178, %s180
    %p187 = scmp.eq.s32.totalorder %s34, 1
    %p188 = por %p186, %p187
    %p189 = scmp.ne.s32.totalorder %s180, %s181
    %p190 = scmp.eq.s32.totalorder %s34, 0
    %p191 = por %p189, %p190
    %p192 = scmp.ne.s32.totalorder %s180, %s181
    %p193 = scmp.eq.s32.totalorder %s35, 1
    %p194 = por %p192, %p193
    %p196 = scmp.ne.s32.totalorder %s181, %s195
    %p197 = scmp.eq.s32.totalorder %s35, 0
    %p198 = por %p196, %p197
    %s200 = sadd.s32 %s199, 1
    %p203 = scmp.eq.s32.totalorder %s29, 1
    %p204 = scmp.ne.s32.totalorder %s199, %s201
    %p205 = scmp.eq.s32.totalorder %s29, 0
    %p206 = por %p204, %p205
    %p207 = scmp.ne.s32.totalorder %s199, %s201
    %p208 = scmp.eq.s32.totalorder %s34, 1
    %p209 = por %p207, %p208
    %p210 = scmp.ne.s32.totalorder %s201, %s202
    %p211 = scmp.eq.s32.totalorder %s34, 0
    %p212 = por %p210, %p211
    %p213 = scmp.ne.s32.totalorder %s201, %s202
    %p214 = scmp.eq.s32.totalorder %s35, 1
    %p215 = por %p213, %p214
    %p217 = scmp.ne.s32.totalorder %s202, %s216
    %p218 = scmp.eq.s32.totalorder %s35, 0
    %p219 = por %p217, %p218
    %s221 = sadd.s32 %s220, 1
    %p224 = scmp.eq.s32.totalorder %s29, 1
    %p225 = scmp.ne.s32.totalorder %s220, %s222
    %p226 = scmp.eq.s32.totalorder %s29, 0
    %p227 = por %p225, %p226
    %p228 = scmp.ne.s32.totalorder %s220, %s222
    %p229 = scmp.eq.s32.totalorder %s34, 1
    %p230 = por %p228, %p229
    %p231 = scmp.ne.s32.totalorder %s222, %s223
    %p232 = scmp.eq.s32.totalorder %s34, 0
    %p233 = por %p231, %p232
    %p234 = scmp.ne.s32.totalorder %s222, %s223
    %p235 = scmp.eq.s32.totalorder %s35, 1
    %p236 = por %p234, %p235
    %p238 = scmp.ne.s32.totalorder %s223, %s237
    %p239 = scmp.eq.s32.totalorder %s35, 0
    %p240 = por %p238, %p239
    %s242 = sadd.s32 %s241, 1
    %p245 = scmp.eq.s32.totalorder %s29, 1
    %p246 = scmp.ne.s32.totalorder %s241, %s243
    %p247 = scmp.eq.s32.totalorder %s29, 0
    %p248 = por %p246, %p247
    %p249 = scmp.ne.s32.totalorder %s241, %s243
    %p250 = scmp.eq.s32.totalorder %s34, 1
    %p251 = por %p249, %p250
    %p252 = scmp.ne.s32.totalorder %s243, %s244
    %p253 = scmp.eq.s32.totalorder %s34, 0
    %p254 = por %p252, %p253
    %p255 = scmp.ne.s32.totalorder %s243, %s244
    %p256 = scmp.eq.s32.totalorder %s35, 1
    %p257 = por %p255, %p256
    %p259 = scmp.ne.s32.totalorder %s244, %s258
    %p260 = scmp.eq.s32.totalorder %s35, 0
    %p261 = por %p259, %p260
    %s263 = sadd.s32 %s262, 1
    %p266 = scmp.eq.s32.totalorder %s29, 1
    %p267 = scmp.ne.s32.totalorder %s262, %s264
    %p268 = scmp.eq.s32.totalorder %s29, 0
    %p269 = por %p267, %p268
    %p270 = scmp.ne.s32.totalorder %s262, %s264
    %p271 = scmp.eq.s32.totalorder %s34, 1
    %p272 = por %p270, %p271
    %p273 = scmp.ne.s32.totalorder %s264, %s265
    %p274 = scmp.eq.s32.totalorder %s34, 0
    %p275 = por %p273, %p274
    %p276 = scmp.ne.s32.totalorder %s264, %s265
    %p277 = scmp.eq.s32.totalorder %s35, 1
    %p278 = por %p276, %p277
    %p280 = scmp.ne.s32.totalorder %s265, %s279
    %p281 = scmp.eq.s32.totalorder %s35, 0
    %p282 = por %p280, %p281
    %s284 = sadd.s32 %s283, 1
    %p287 = scmp.eq.s32.totalorder %s29, 1
    %p288 = scmp.ne.s32.totalorder %s283, %s285
    %p289 = scmp.eq.s32.totalorder %s29, 0
    %p290 = por %p288, %p289
    %p291 = scmp.ne.s32.totalorder %s283, %s285
    %p292 = scmp.eq.s32.totalorder %s34, 1
    %p293 = por %p291, %p292
    %p294 = scmp.ne.s32.totalorder %s285, %s286
    %p295 = scmp.eq.s32.totalorder %s34, 0
    %p296 = por %p294, %p295
    %p297 = scmp.ne.s32.totalorder %s285, %s286
    %p298 = scmp.eq.s32.totalorder %s35, 1
    %p299 = por %p297, %p298
    %p301 = scmp.ne.s32.totalorder %s286, %s300
    %p302 = scmp.eq.s32.totalorder %s35, 0
    %p303 = por %p301, %p302
    %s305 = sadd.s32 %s304, 1
    %p308 = scmp.eq.s32.totalorder %s29, 1
    %p309 = scmp.ne.s32.totalorder %s304, %s306
    %p310 = scmp.eq.s32.totalorder %s29, 0
    %p311 = por %p309, %p310
    %p312 = scmp.ne.s32.totalorder %s304, %s306
    %p313 = scmp.eq.s32.totalorder %s34, 1
    %p314 = por %p312, %p313
    %p315 = scmp.ne.s32.totalorder %s306, %s307
    %p316 = scmp.eq.s32.totalorder %s34, 0
    %p317 = por %p315, %p316
    %p318 = scmp.ne.s32.totalorder %s306, %s307
    %p319 = scmp.eq.s32.totalorder %s35, 1
    %p320 = por %p318, %p319
    %p322 = scmp.ne.s32.totalorder %s307, %s321
    %p323 = scmp.eq.s32.totalorder %s35, 0
    %p324 = por %p322, %p323
    %s326 = sadd.s32 %s325, 1
    %p329 = scmp.eq.s32.totalorder %s29, 1
    %p330 = scmp.ne.s32.totalorder %s325, %s327
    %p331 = scmp.eq.s32.totalorder %s29, 0
    %p332 = por %p330, %p331
    %p333 = scmp.ne.s32.totalorder %s325, %s327
    %p334 = scmp.eq.s32.totalorder %s34, 1
    %p335 = por %p333, %p334
    %p336 = scmp.ne.s32.totalorder %s327, %s328
    %p337 = scmp.eq.s32.totalorder %s34, 0
    %p338 = por %p336, %p337
    %p339 = scmp.ne.s32.totalorder %s327, %s328
    %p340 = scmp.eq.s32.totalorder %s35, 1
    %p341 = por %p339, %p340
    %p343 = scmp.ne.s32.totalorder %s328, %s342
    %p344 = scmp.eq.s32.totalorder %s35, 0
    %p345 = por %p343, %p344
    %s347 = sadd.s32 %s346, 1
    %p350 = scmp.eq.s32.totalorder %s29, 1
    %p351 = scmp.ne.s32.totalorder %s346, %s348
    %p352 = scmp.eq.s32.totalorder %s29, 0
    %p353 = por %p351, %p352
    %p354 = scmp.ne.s32.totalorder %s346, %s348
    %p355 = scmp.eq.s32.totalorder %s34, 1
    %p356 = por %p354, %p355
    %p357 = scmp.ne.s32.totalorder %s348, %s349
    %p358 = scmp.eq.s32.totalorder %s34, 0
    %p359 = por %p357, %p358
    %p360 = scmp.ne.s32.totalorder %s348, %s349
    %p361 = scmp.eq.s32.totalorder %s35, 1
    %p362 = por %p360, %p361
    %p364 = scmp.ne.s32.totalorder %s349, %s363
    %p365 = scmp.eq.s32.totalorder %s35, 0
    %p366 = por %p364, %p365
    %s368 = sadd.s32 %s367, 1
    %p371 = scmp.eq.s32.totalorder %s29, 1
    %p372 = scmp.ne.s32.totalorder %s367, %s369
    %p373 = scmp.eq.s32.totalorder %s29, 0
    %p374 = por %p372, %p373
    %p375 = scmp.ne.s32.totalorder %s367, %s369
    %p376 = scmp.eq.s32.totalorder %s34, 1
    %p377 = por %p375, %p376
    %p378 = scmp.ne.s32.totalorder %s369, %s370
    %p379 = scmp.eq.s32.totalorder %s34, 0
    %p380 = por %p378, %p379
    %p381 = scmp.ne.s32.totalorder %s369, %s370
    %p382 = scmp.eq.s32.totalorder %s35, 1
    %p383 = por %p381, %p382
    %p385 = scmp.ne.s32.totalorder %s370, %s384
    %p386 = scmp.eq.s32.totalorder %s35, 0
    %p387 = por %p385, %p386
    %s389 = sadd.s32 %s388, 1
    %p392 = scmp.eq.s32.totalorder %s29, 1
    %p393 = scmp.ne.s32.totalorder %s388, %s390
    %p394 = scmp.eq.s32.totalorder %s29, 0
    %p395 = por %p393, %p394
    %p396 = scmp.ne.s32.totalorder %s388, %s390
    %p397 = scmp.eq.s32.totalorder %s34, 1
    %p398 = por %p396, %p397
    %p399 = scmp.ne.s32.totalorder %s390, %s391
    %p400 = scmp.eq.s32.totalorder %s34, 0
    %p401 = por %p399, %p400
    %p402 = scmp.ne.s32.totalorder %s390, %s391
    %p403 = scmp.eq.s32.totalorder %s35, 1
    %p404 = por %p402, %p403
    %p406 = scmp.ne.s32.totalorder %s391, %s405
    %p407 = scmp.eq.s32.totalorder %s35, 0
    %p408 = por %p406, %p407
    %s410 = sadd.s32 %s409, 1
    %p413 = scmp.eq.s32.totalorder %s29, 1
    %p414 = scmp.ne.s32.totalorder %s409, %s411
    %p415 = scmp.eq.s32.totalorder %s29, 0
    %p416 = por %p414, %p415
    %p417 = scmp.ne.s32.totalorder %s409, %s411
    %p418 = scmp.eq.s32.totalorder %s34, 1
    %p419 = por %p417, %p418
    %p420 = scmp.ne.s32.totalorder %s411, %s412
    %p421 = scmp.eq.s32.totalorder %s34, 0
    %p422 = por %p420, %p421
    %p423 = scmp.ne.s32.totalorder %s411, %s412
    %p424 = scmp.eq.s32.totalorder %s35, 1
    %p425 = por %p423, %p424
    %p427 = scmp.ne.s32.totalorder %s412, %s426
    %p428 = scmp.eq.s32.totalorder %s35, 0
    %p429 = por %p427, %p428
    %s431 = sadd.s32 %s430, 1
    %p434 = scmp.eq.s32.totalorder %s29, 1
    %p435 = scmp.ne.s32.totalorder %s430, %s432
    %p436 = scmp.eq.s32.totalorder %s29, 0
    %p437 = por %p435, %p436
    %p438 = scmp.ne.s32.totalorder %s430, %s432
    %p439 = scmp.eq.s32.totalorder %s34, 1
    %p440 = por %p438, %p439
    %p441 = scmp.ne.s32.totalorder %s432, %s433
    %p442 = scmp.eq.s32.totalorder %s34, 0
    %p443 = por %p441, %p442
    %p444 = scmp.ne.s32.totalorder %s432, %s433
    %p445 = scmp.eq.s32.totalorder %s35, 1
    %p446 = por %p444, %p445
    %p448 = scmp.ne.s32.totalorder %s433, %s447
    %p449 = scmp.eq.s32.totalorder %s35, 0
    %p450 = por %p448, %p449
    %s452 = sadd.s32 %s451, 1
    %p455 = scmp.eq.s32.totalorder %s29, 1
    %p456 = scmp.ne.s32.totalorder %s451, %s453
    %p457 = scmp.eq.s32.totalorder %s29, 0
    %p458 = por %p456, %p457
    %p459 = scmp.ne.s32.totalorder %s451, %s453
    %p460 = scmp.eq.s32.totalorder %s34, 1
    %p461 = por %p459, %p460
    %p462 = scmp.ne.s32.totalorder %s453, %s454
    %p463 = scmp.eq.s32.totalorder %s34, 0
    %p464 = por %p462, %p463
    %p465 = scmp.ne.s32.totalorder %s453, %s454
    %p466 = scmp.eq.s32.totalorder %s35, 1
    %p467 = por %p465, %p466
    %p469 = scmp.ne.s32.totalorder %s454, %s468
    %p470 = scmp.eq.s32.totalorder %s35, 0
    %p471 = por %p469, %p470
    %s472 = ssub.s32 %s29, %s36
    %p473 = scmp.eq.s32.totalorder %s472, 0
    %s475 = sadd.s32 %s474, 1
    %s476 = scalar_select %p473, %s474, %s475
    %p479 = pneg %p473
    %p480 = scmp.eq.s32.totalorder %s29, 1
    %p481 = por %p479, %p480
    %p482 = scmp.ne.s32.totalorder %s474, %s477
    %p483 = scmp.eq.s32.totalorder %s29, 0
    %p484 = por %p482, %p483
    %p485 = scmp.ne.s32.totalorder %s474, %s477
    %p486 = scmp.eq.s32.totalorder %s34, 1
    %p487 = por %p485, %p486
    %p488 = scmp.ne.s32.totalorder %s477, %s478
    %p489 = scmp.eq.s32.totalorder %s34, 0
    %p490 = por %p488, %p489
    %p491 = scmp.ne.s32.totalorder %s477, %s478
    %p492 = scmp.eq.s32.totalorder %s35, 1
    %p493 = por %p491, %p492
    %p495 = scmp.ne.s32.totalorder %s478, %s494
    %p496 = scmp.eq.s32.totalorder %s35, 0
    %p497 = por %p495, %p496
    %s498 = ssub.s32 %s29, %s36
    %p499 = scmp.eq.s32.totalorder %s498, 0
    %s501 = sadd.s32 %s500, 1
    %s502 = scalar_select %p499, %s500, %s501
    %p505 = pneg %p499
    %p506 = scmp.eq.s32.totalorder %s29, 1
    %p507 = por %p505, %p506
    %p508 = scmp.ne.s32.totalorder %s500, %s503
    %p509 = scmp.eq.s32.totalorder %s29, 0
    %p510 = por %p508, %p509
    %p511 = scmp.ne.s32.totalorder %s500, %s503
    %p512 = scmp.eq.s32.totalorder %s34, 1
    %p513 = por %p511, %p512
    %p514 = scmp.ne.s32.totalorder %s503, %s504
    %p515 = scmp.eq.s32.totalorder %s34, 0
    %p516 = por %p514, %p515
    %p517 = scmp.ne.s32.totalorder %s503, %s504
    %p518 = scmp.eq.s32.totalorder %s35, 1
    %p519 = por %p517, %p518
    %p521 = scmp.ne.s32.totalorder %s504, %s520
    %p522 = scmp.eq.s32.totalorder %s35, 0
    %p523 = por %p521, %p522
    %s524 = ssub.s32 %s29, %s36
    %p525 = scmp.eq.s32.totalorder %s524, 0
    %s527 = sadd.s32 %s526, 1
    %s528 = scalar_select %p525, %s526, %s527
    %p531 = pneg %p525
    %p532 = scmp.eq.s32.totalorder %s29, 1
    %p533 = por %p531, %p532
    %p534 = scmp.ne.s32.totalorder %s526, %s529
    %p535 = scmp.eq.s32.totalorder %s29, 0
    %p536 = por %p534, %p535
    %p537 = scmp.ne.s32.totalorder %s526, %s529
    %p538 = scmp.eq.s32.totalorder %s34, 1
    %p539 = por %p537, %p538
    %p540 = scmp.ne.s32.totalorder %s529, %s530
    %p541 = scmp.eq.s32.totalorder %s34, 0
    %p542 = por %p540, %p541
    %p543 = scmp.ne.s32.totalorder %s529, %s530
    %p544 = scmp.eq.s32.totalorder %s35, 1
    %p545 = por %p543, %p544
    %p547 = scmp.ne.s32.totalorder %s530, %s546
    %p548 = scmp.eq.s32.totalorder %s35, 0
    %p549 = por %p547, %p548
    %p550 = scmp.le.s32.totalorder 1, %s29
    %p551 = scmp.lt.s32.totalorder %s29, 3
    %p552 = pnand %p550, %p551
    %p553 = pneg %p552
    // Predicated region
    $region9: #{bifpn_forward.1} parent=5 // pred_check
      _
    $region10: #{bifpn_forward.1} parent=5 // pred_check_branch
      %555 = sbr.rel (%p552) target = $region12
    $region11: #{bifpn_forward.1} parent=5 // pred_region
      %s556 = ssub.s32 %s29, 1
      // Predicated region
      $region13: #{bifpn_forward.1} parent=11 // pred_check
        %p557 = pneg %p128
      $region14: #{bifpn_forward.1} parent=11 // pred_check_branch
        %559 = sbr.rel (%p557) target = $region16
      $region15: #{bifpn_forward.1} parent=11 // pred_region
        _
      $region16: #{bifpn_forward.1} parent=11 // pred_fallthru
        _
      // Predicated region
      $region17: #{bifpn_forward.1} parent=11 // pred_check
        %p560 = pneg %p149
      $region18: #{bifpn_forward.1} parent=11 // pred_check_branch
        %562 = sbr.rel (%p560) target = $region20
      $region19: #{bifpn_forward.1} parent=11 // pred_region
        _
      $region20: #{bifpn_forward.1} parent=11 // pred_fallthru
        _
      // Predicated region
      $region21: #{bifpn_forward.1} parent=11 // pred_check
        %p563 = pneg %p170
      $region22: #{bifpn_forward.1} parent=11 // pred_check_branch
        %565 = sbr.rel (%p563) target = $region24
      $region23: #{bifpn_forward.1} parent=11 // pred_region
        _
      $region24: #{bifpn_forward.1} parent=11 // pred_fallthru
        _
      // Predicated region
      $region25: #{bifpn_forward.1} parent=11 // pred_check
        %p566 = pneg %p191
      $region26: #{bifpn_forward.1} parent=11 // pred_check_branch
        %568 = sbr.rel (%p566) target = $region28
      $region27: #{bifpn_forward.1} parent=11 // pred_region
        _
      $region28: #{bifpn_forward.1} parent=11 // pred_fallthru
        _
      // Predicated region
      $region29: #{bifpn_forward.1} parent=11 // pred_check
        %p569 = pneg %p212
      $region30: #{bifpn_forward.1} parent=11 // pred_check_branch
        %571 = sbr.rel (%p569) target = $region32
      $region31: #{bifpn_forward.1} parent=11 // pred_region
        _
      $region32: #{bifpn_forward.1} parent=11 // pred_fallthru
        _
      // Predicated region
      $region33: #{bifpn_forward.1} parent=11 // pred_check
        %p572 = pneg %p233
      $region34: #{bifpn_forward.1} parent=11 // pred_check_branch
        %574 = sbr.rel (%p572) target = $region36
      $region35: #{bifpn_forward.1} parent=11 // pred_region
        _
      $region36: #{bifpn_forward.1} parent=11 // pred_fallthru
        _
      // Predicated region
      $region37: #{bifpn_forward.1} parent=11 // pred_check
        %p575 = pneg %p254
      $region38: #{bifpn_forward.1} parent=11 // pred_check_branch
        %577 = sbr.rel (%p575) target = $region40
      $region39: #{bifpn_forward.1} parent=11 // pred_region
        _
      $region40: #{bifpn_forward.1} parent=11 // pred_fallthru
        _
      // Predicated region
      $region41: #{bifpn_forward.1} parent=11 // pred_check
        %p578 = pneg %p275
      $region42: #{bifpn_forward.1} parent=11 // pred_check_branch
        %580 = sbr.rel (%p578) target = $region44
      $region43: #{bifpn_forward.1} parent=11 // pred_region
        _
      $region44: #{bifpn_forward.1} parent=11 // pred_fallthru
        _
      // Predicated region
      $region45: #{bifpn_forward.1} parent=11 // pred_check
        %p581 = pneg %p296
      $region46: #{bifpn_forward.1} parent=11 // pred_check_branch
        %583 = sbr.rel (%p581) target = $region48
      $region47: #{bifpn_forward.1} parent=11 // pred_region
        _
      $region48: #{bifpn_forward.1} parent=11 // pred_fallthru
        _
      // Predicated region
      $region49: #{bifpn_forward.1} parent=11 // pred_check
        %p584 = pneg %p317
      $region50: #{bifpn_forward.1} parent=11 // pred_check_branch
        %586 = sbr.rel (%p584) target = $region52
      $region51: #{bifpn_forward.1} parent=11 // pred_region
        _
      $region52: #{bifpn_forward.1} parent=11 // pred_fallthru
        _
      // Predicated region
      $region53: #{bifpn_forward.1} parent=11 // pred_check
        %p587 = pneg %p338
      $region54: #{bifpn_forward.1} parent=11 // pred_check_branch
        %589 = sbr.rel (%p587) target = $region56
      $region55: #{bifpn_forward.1} parent=11 // pred_region
        _
      $region56: #{bifpn_forward.1} parent=11 // pred_fallthru
        _
      // Predicated region
      $region57: #{bifpn_forward.1} parent=11 // pred_check
        %p590 = pneg %p359
      $region58: #{bifpn_forward.1} parent=11 // pred_check_branch
        %592 = sbr.rel (%p590) target = $region60
      $region59: #{bifpn_forward.1} parent=11 // pred_region
        _
      $region60: #{bifpn_forward.1} parent=11 // pred_fallthru
        _
      // Predicated region
      $region61: #{bifpn_forward.1} parent=11 // pred_check
        %p593 = pneg %p380
      $region62: #{bifpn_forward.1} parent=11 // pred_check_branch
        %595 = sbr.rel (%p593) target = $region64
      $region63: #{bifpn_forward.1} parent=11 // pred_region
        _
      $region64: #{bifpn_forward.1} parent=11 // pred_fallthru
        _
      // Predicated region
      $region65: #{bifpn_forward.1} parent=11 // pred_check
        %p596 = pneg %p401
      $region66: #{bifpn_forward.1} parent=11 // pred_check_branch
        %598 = sbr.rel (%p596) target = $region68
      $region67: #{bifpn_forward.1} parent=11 // pred_region
        _
      $region68: #{bifpn_forward.1} parent=11 // pred_fallthru
        _
      // Predicated region
      $region69: #{bifpn_forward.1} parent=11 // pred_check
        %p599 = pneg %p422
      $region70: #{bifpn_forward.1} parent=11 // pred_check_branch
        %601 = sbr.rel (%p599) target = $region72
      $region71: #{bifpn_forward.1} parent=11 // pred_region
        _
      $region72: #{bifpn_forward.1} parent=11 // pred_fallthru
        _
      // Predicated region
      $region73: #{bifpn_forward.1} parent=11 // pred_check
        %p602 = pneg %p443
      $region74: #{bifpn_forward.1} parent=11 // pred_check_branch
        %604 = sbr.rel (%p602) target = $region76
      $region75: #{bifpn_forward.1} parent=11 // pred_region
        _
      $region76: #{bifpn_forward.1} parent=11 // pred_fallthru
        _
      // Predicated region
      $region77: #{bifpn_forward.1} parent=11 // pred_check
        %p605 = pneg %p464
      $region78: #{bifpn_forward.1} parent=11 // pred_check_branch
        %607 = sbr.rel (%p605) target = $region80
      $region79: #{bifpn_forward.1} parent=11 // pred_region
        _
      $region80: #{bifpn_forward.1} parent=11 // pred_fallthru
        _
    $region12: #{bifpn_forward.1} parent=5 // pred_fallthru
      _
    %p608 = scmp.lt.s32.totalorder %s29, 2
    // Predicated region
    $region81: #{bifpn_forward.1} parent=5 // pred_check
      %p609 = pneg %p608
    $region82: #{bifpn_forward.1} parent=5 // pred_check_branch
      %611 = sbr.rel (%p609) target = $region84
    $region83: #{bifpn_forward.1} parent=5 // pred_region
      // Predicated region
      $region85: #{bifpn_forward.1} parent=83 // pred_check
        %p612 = pneg %p49
      $region86: #{bifpn_forward.1} parent=83 // pred_check_branch
        %614 = sbr.rel (%p612) target = $region88
      $region87: #{bifpn_forward.1} parent=83 // pred_region
        %p615 = scmp.lt.s32.totalorder %s29, 1
        %s616 = scalar_select %p615, %s29, 1
        %s617 = smul.addr %s616, 2
        %s618 = smul.addr %s617, 4
        %s619 = scalar_lea.vmem %s0, %s618
      $region88: #{bifpn_forward.1} parent=83 // pred_fallthru
        _
      // Predicated region
      $region89: #{bifpn_forward.1} parent=83 // pred_check
        %p620 = pneg %p75
      $region90: #{bifpn_forward.1} parent=83 // pred_check_branch
        %622 = sbr.rel (%p620) target = $region92
      $region91: #{bifpn_forward.1} parent=83 // pred_region
        %p623 = scmp.lt.s32.totalorder %s29, 1
        %s624 = scalar_select %p623, %s29, 1
        %s625 = smul.addr %s624, 4
        %s626 = scalar_lea.vmem %s1, %s625
      $region92: #{bifpn_forward.1} parent=83 // pred_fallthru
        _
      // Predicated region
      $region93: #{bifpn_forward.1} parent=83 // pred_check
        %p627 = pneg %p101
      $region94: #{bifpn_forward.1} parent=83 // pred_check_branch
        %629 = sbr.rel (%p627) target = $region96
      $region95: #{bifpn_forward.1} parent=83 // pred_region
        %p630 = scmp.lt.s32.totalorder %s29, 1
        %s631 = scalar_select %p630, %s29, 1
        %s632 = smul.addr %s631, 4
        %s633 = scalar_lea.vmem %s2, %s632
      $region96: #{bifpn_forward.1} parent=83 // pred_fallthru
        _
    $region84: #{bifpn_forward.1} parent=5 // pred_fallthru
      _
    %p634 = scmp.le.s32.totalorder 1, %s29
    %p635 = scmp.lt.s32.totalorder %s29, 3
    %p636 = pnand %p634, %p635
    %p637 = pneg %p636
    // Predicated region
    $region97: #{bifpn_forward.1} parent=5 // pred_check
      _
    $region98: #{bifpn_forward.1} parent=5 // pred_check_branch
      %639 = sbr.rel (%p636) target = $region100
    $region99: #{bifpn_forward.1} parent=5 // pred_region
      %s640 = ssub.s32 %s29, 1
      %p641 = scmp.lt.s32.totalorder %s34, 1
      %s642 = scalar_select %p641, %s34, 1
      %s643 = smul.addr %s642, 2
      %s644 = smul.addr %s643, 4
      %s645 = scalar_lea.vmem %s0, %s644
      %p646 = pneg %p55
      %p647 = pneg %p52
      %p648 = scmp.lt.s32.totalorder %s34, 1
      %s649 = scalar_select %p648, %s34, 1
      %s650 = smul.addr %s649, 4
      %s651 = scalar_lea.vmem %s1, %s650
      %p652 = pneg %p81
      %p653 = pneg %p78
      %p654 = scmp.lt.s32.totalorder %s34, 1
      %s655 = scalar_select %p654, %s34, 1
      %s656 = smul.addr %s655, 4
      %s657 = scalar_lea.vmem %s2, %s656
      %p658 = pneg %p107
      %p659 = pneg %p104
      %p660 = pneg %p128
      %p661 = pneg %p125
      %p662 = pneg %p149
      %p663 = pneg %p146
      %p664 = pneg %p170
      %p665 = pneg %p167
      %p666 = pneg %p191
      %p667 = pneg %p188
      %p668 = pneg %p212
      %p669 = pneg %p209
      %p670 = pneg %p233
      %p671 = pneg %p230
      %p672 = pneg %p254
      %p673 = pneg %p251
      %p674 = pneg %p275
      %p675 = pneg %p272
      %p676 = pneg %p296
      %p677 = pneg %p293
      %p678 = pneg %p317
      %p679 = pneg %p314
      %p680 = pneg %p338
      %p681 = pneg %p335
      %p682 = pneg %p359
      %p683 = pneg %p356
      %p684 = pneg %p380
      %p685 = pneg %p377
      %p686 = pneg %p401
      %p687 = pneg %p398
      %p688 = pneg %p422
      %p689 = pneg %p419
      %p690 = pneg %p443
      %p691 = pneg %p440
      %p692 = pneg %p464
      %p693 = pneg %p461
      %p694 = pneg %p490
      %p695 = pneg %p487
      %p696 = scmp.lt.s32.totalorder %s34, 1
      %s697 = scalar_select %p696, %s34, 1
      %s698 = smul.addr %s697, 2
      %s699 = smul.addr %s698, 8
      %s700 = scalar_lea.vmem %s20, %s699
      %p701 = pneg %p516
      %p702 = pneg %p513
      %p703 = scmp.lt.s32.totalorder %s34, 1
      %s704 = scalar_select %p703, %s34, 1
      %s705 = smul.addr %s704, 2
      %s706 = smul.addr %s705, 8
      %s707 = scalar_lea.vmem %s21, %s706
      %p708 = pneg %p542
      %p709 = pneg %p539
      %p710 = scmp.lt.s32.totalorder %s34, 1
      %s711 = scalar_select %p710, %s34, 1
      %s712 = smul.addr %s711, 2
      %s713 = smul.addr %s712, 8
      %s714 = scalar_lea.vmem %s22, %s713
      %p715 = scmp.lt.s32.totalorder %s34, 1
      %s716 = scalar_select %p715, %s34, 1
      %s717 = smul.addr %s716, 2
      %s718 = smul.addr %s717, 4
      %s719 = scalar_lea.vmem %s0, %s718
      %p720 = scmp.lt.s32.totalorder %s34, 1
      %s721 = scalar_select %p720, %s34, 1
      %s722 = smul.addr %s721, 4
      %s723 = scalar_lea.vmem %s1, %s722
      %p724 = scmp.lt.s32.totalorder %s34, 1
      %s725 = scalar_select %p724, %s34, 1
      %s726 = smul.addr %s725, 4
      %s727 = scalar_lea.vmem %s2, %s726
      %p728 = scmp.lt.s32.totalorder %s34, 1
      %s729 = scalar_select %p728, %s34, 1
      %s730 = smul.addr %s729, 2
      %s731 = smul.addr %s730, 8
      %s732 = scalar_lea.vmem %s20, %s731
      %p733 = scmp.lt.s32.totalorder %s34, 1
      %s734 = scalar_select %p733, %s34, 1
      %s735 = smul.addr %s734, 2
      %s736 = smul.addr %s735, 8
      %s737 = scalar_lea.vmem %s21, %s736
      %p738 = scmp.lt.s32.totalorder %s34, 1
      %s739 = scalar_select %p738, %s34, 1
      %s740 = smul.addr %s739, 2
      %s741 = smul.addr %s740, 8
      %s742 = scalar_lea.vmem %s22, %s741
      %v743 = vld [vmem:[%s3] sm:$0xff]
      %v744 = vld [vmem:[%s3 + $0x8] sm:$0xff]
      %v745 = vld [vmem:[%s719] sm:$0xff]
      %v746 = vld [vmem:[%s4] sm:$0xff]
      %v747 = vld [vmem:[%s4 + $0x8] sm:$0xff]
      %749 = vset.pattern.permute.xlu0 0
      %750 = vperm.xlu0 %749, %v746
      %v751 = vpop.permute.xlu0 %750
      %754 = vset.pattern.permute.xlu0 0
      %755 = vperm.xlu0 %754, %v747
      %v756 = vpop.permute.xlu0 %755
      %v759 = vcombine.high %v745, %v745
      %vm760 = vcmask 31744
      %v762 = vsel %vm760, %v743, 0
      %v765 = vsel %vm760, %v744, 0
      %vm767 = vcmask 1043456
      %v768 = vsel %vm767, %v745, 0
      %v770 = vsel %vm767, %v759, 0
      %772 = vmatprep.subr.mxu0 %v770
      %773 = vmatpush1.msra.mxu0 %v768
      %774 = vmatprep.subr.mxu0 0.0
      %775 = vmatpush1.msra.mxu0 0.0
      %776 = vmatprep.subr.mxu0 0.0
      %777 = vmatpush1.msra.mxu0 0.0
      %778 = vmatprep.subr.mxu0 0.0
      %779 = vmatpush1.msra.mxu0 0.0
      %780 = vmatprep.subr.mxu0 0.0
      %781 = vmatpush1.msra.mxu0 0.0
      %782 = vmatprep.subr.mxu0 0.0
      %783 = vmatpush1.msra.mxu0 0.0
      %784 = vmatprep.subr.mxu0 0.0
      %785 = vmatpush1.msra.mxu0 0.0
      %786 = vmatprep.subr.mxu0 0.0
      %787 = vmatpush1.msra.mxu0 0.0
      %788 = vmatprep.subr.mxu0 0.0
      %789 = vmatpush1.msra.mxu0 0.0
      %790 = vmatprep.subr.mxu0 0.0
      %791 = vmatpush1.msra.mxu0 0.0
      %792 = vmatprep.subr.mxu0 0.0
      %793 = vmatpush1.msra.mxu0 0.0
      %794 = vmatprep.subr.mxu0 0.0
      %795 = vmatpush1.msra.mxu0 0.0
      %796 = vmatprep.subr.mxu0 0.0
      %797 = vmatpush1.msra.mxu0 0.0
      %798 = vmatprep.subr.mxu0 0.0
      %799 = vmatpush1.msra.mxu0 0.0
      %800 = vmatprep.subr.mxu0 0.0
      %801 = vmatpush1.msra.mxu0 0.0
      %802 = vmatprep.subr.mxu0 0.0
      %803 = vmatpush1.msra.mxu0 0.0
      %804 = vmatprep.subr.mxu0 0.0
      %805 = vmatpush1.msra.mxu0 0.0
      %806 = vmatprep.subr.mxu0 0.0
      %807 = vmatpush1.msra.mxu0 0.0
      %808 = vmatprep.subr.mxu0 0.0
      %809 = vmatpush1.msra.mxu0 0.0
      %810 = vmatprep.subr.mxu0 0.0
      %811 = vmatpush1.msra.mxu0 0.0
      %812 = vmatprep.subr.mxu0 0.0
      %813 = vmatpush1.msra.mxu0 0.0
      %814 = vmatprep.subr.mxu0 0.0
      %815 = vmatpush1.msra.mxu0 0.0
      %816 = vmatprep.subr.mxu0 0.0
      %817 = vmatpush1.msra.mxu0 0.0
      %818 = vmatprep.subr.mxu0 0.0
      %819 = vmatpush1.msra.mxu0 0.0
      %820 = vmatprep.subr.mxu0 0.0
      %821 = vmatpush1.msra.mxu0 0.0
      %822 = vmatprep.subr.mxu0 0.0
      %823 = vmatpush1.msra.mxu0 0.0
      %824 = vmatprep.subr.mxu0 0.0
      %825 = vmatpush1.msra.mxu0 0.0
      %826 = vmatprep.subr.mxu0 0.0
      %827 = vmatpush1.msra.mxu0 0.0
      %828 = vmatprep.subr.mxu0 0.0
      %829 = vmatpush1.msra.mxu0 0.0
      %830 = vmatprep.subr.mxu0 0.0
      %831 = vmatpush1.msra.mxu0 0.0
      %832 = vmatprep.subr.mxu0 0.0
      %833 = vmatpush1.msra.mxu0 0.0
      %834 = vmatprep.subr.mxu0 0.0
      %835 = vmatpush1.msra.mxu0 0.0
      %836 = vmatprep.mubr.f32.mxu0 0.0
      %837 = vmatmul.mubr.f32.gmra.mrb[0].mxu0 %v762
      %v838 = vpop.f32.mrb[0].mxu0
      %v839 = vadd.f32 %v751, %v838
      %v840 = vpop.f32.mrb[0].mxu0
      %v841 = vadd.f32 %v751, %v840
      %842 = vmatprep.mubr.f32.mxu0 0.0
      %843 = vmatmul.mubr.f32.gmra.mrb[0].mxu0 %v765
      %v844 = vpop.f32.mrb[0].mxu0
      %v845 = vadd.f32 %v756, %v844
      %v846 = vpop.f32.mrb[0].mxu0
      %v847 = vadd.f32 %v756, %v846
      %848 = vdwg.mxu0
      %v849 = vld [vmem:[%s5] sm:$0xff]
      %v850 = vld [vmem:[%s5 + $0x8] sm:$0xff]
      %v851 = vld [vmem:[%s723] sm:$0xf]
      %v852 = vld [vmem:[%s6] sm:$0xff]
      %v853 = vld [vmem:[%s6 + $0x8] sm:$0xff]
      %855 = vset.pattern.permute.xlu0 0
      %856 = vperm.xlu0 %855, %v852
      %v857 = vpop.permute.xlu0 %856
      %860 = vset.pattern.permute.xlu0 0
      %861 = vperm.xlu0 %860, %v853
      %v862 = vpop.permute.xlu0 %861
      %v865 = vsel %vm760, %v849, 0
      %v868 = vsel %vm760, %v850, 0
      %v871 = vsel %vm767, %v851, 0
      %873 = vmatprep.subr.mxu0 0.0
      %874 = vmatpush1.msra.mxu0 %v871
      %875 = vmatprep.subr.mxu0 0.0
      %876 = vmatpush1.msra.mxu0 0.0
      %877 = vmatprep.subr.mxu0 0.0
      %878 = vmatpush1.msra.mxu0 0.0
      %879 = vmatprep.subr.mxu0 0.0
      %880 = vmatpush1.msra.mxu0 0.0
      %881 = vmatprep.subr.mxu0 0.0
      %882 = vmatpush1.msra.mxu0 0.0
      %883 = vmatprep.subr.mxu0 0.0
      %884 = vmatpush1.msra.mxu0 0.0
      %885 = vmatprep.subr.mxu0 0.0
      %886 = vmatpush1.msra.mxu0 0.0
      %887 = vmatprep.subr.mxu0 0.0
      %888 = vmatpush1.msra.mxu0 0.0
      %889 = vmatprep.subr.mxu0 0.0
      %890 = vmatpush1.msra.mxu0 0.0
      %891 = vmatprep.subr.mxu0 0.0
      %892 = vmatpush1.msra.mxu0 0.0
      %893 = vmatprep.subr.mxu0 0.0
      %894 = vmatpush1.msra.mxu0 0.0
      %895 = vmatprep.subr.mxu0 0.0
      %896 = vmatpush1.msra.mxu0 0.0
      %897 = vmatprep.subr.mxu0 0.0
      %898 = vmatpush1.msra.mxu0 0.0
      %899 = vmatprep.subr.mxu0 0.0
      %900 = vmatpush1.msra.mxu0 0.0
      %901 = vmatprep.subr.mxu0 0.0
      %902 = vmatpush1.msra.mxu0 0.0
      %903 = vmatprep.subr.mxu0 0.0
      %904 = vmatpush1.msra.mxu0 0.0
      %905 = vmatprep.subr.mxu0 0.0
      %906 = vmatpush1.msra.mxu0 0.0
      %907 = vmatprep.subr.mxu0 0.0
      %908 = vmatpush1.msra.mxu0 0.0
      %909 = vmatprep.subr.mxu0 0.0
      %910 = vmatpush1.msra.mxu0 0.0
      %911 = vmatprep.subr.mxu0 0.0
      %912 = vmatpush1.msra.mxu0 0.0
      %913 = vmatprep.subr.mxu0 0.0
      %914 = vmatpush1.msra.mxu0 0.0
      %915 = vmatprep.subr.mxu0 0.0
      %916 = vmatpush1.msra.mxu0 0.0
      %917 = vmatprep.subr.mxu0 0.0
      %918 = vmatpush1.msra.mxu0 0.0
      %919 = vmatprep.subr.mxu0 0.0
      %920 = vmatpush1.msra.mxu0 0.0
      %921 = vmatprep.subr.mxu0 0.0
      %922 = vmatpush1.msra.mxu0 0.0
      %923 = vmatprep.subr.mxu0 0.0
      %924 = vmatpush1.msra.mxu0 0.0
      %925 = vmatprep.subr.mxu0 0.0
      %926 = vmatpush1.msra.mxu0 0.0
      %927 = vmatprep.subr.mxu0 0.0
      %928 = vmatpush1.msra.mxu0 0.0
      %929 = vmatprep.subr.mxu0 0.0
      %930 = vmatpush1.msra.mxu0 0.0
      %931 = vmatprep.subr.mxu0 0.0
      %932 = vmatpush1.msra.mxu0 0.0
      %933 = vmatprep.subr.mxu0 0.0
      %934 = vmatpush1.msra.mxu0 0.0
      %935 = vmatprep.subr.mxu0 0.0
      %936 = vmatpush1.msra.mxu0 0.0
      %937 = vmatprep.mubr.f32.mxu0 0.0
      %938 = vmatmul.mubr.f32.gmra.mrb[0].mxu0 %v865
      %v939 = vpop.f32.mrb[0].mxu0
      %v940 = vadd.f32 %v857, %v939
      %v941 = vpop.f32.mrb[0].mxu0
      %942 = vmatprep.mubr.f32.mxu0 0.0
      %943 = vmatmul.mubr.f32.gmra.mrb[0].mxu0 %v868
      %v944 = vpop.f32.mrb[0].mxu0
      %v945 = vadd.f32 %v862, %v944
      %v946 = vpop.f32.mrb[0].mxu0
      %947 = vdwg.mxu0
      %v948 = vld [vmem:[%s7] sm:$0xff]
      %v949 = vld [vmem:[%s7 + $0x8] sm:$0xff]
      %v950 = vld [vmem:[%s727] sm:$0xf]
      %v951 = vld [vmem:[%s8] sm:$0xff]
      %v952 = vld [vmem:[%s8 + $0x8] sm:$0xff]
      %954 = vset.pattern.permute.xlu0 0
      %955 = vperm.xlu0 %954, %v951
      %v956 = vpop.permute.xlu0 %955
      %959 = vset.pattern.permute.xlu0 0
      %960 = vperm.xlu0 %959, %v952
      %v961 = vpop.permute.xlu0 %960
      %v964 = vsel %vm760, %v948, 0
      %v967 = vsel %vm760, %v949, 0
      %v970 = vsel %vm767, %v950, 0
      %972 = vmatprep.subr.mxu0 0.0
      %973 = vmatpush1.msra.mxu0 %v970
      %974 = vmatprep.subr.mxu0 0.0
      %975 = vmatpush1.msra.mxu0 0.0
      %976 = vmatprep.subr.mxu0 0.0
      %977 = vmatpush1.msra.mxu0 0.0
      %978 = vmatprep.subr.mxu0 0.0
      %979 = vmatpush1.msra.mxu0 0.0
      %980 = vmatprep.subr.mxu0 0.0
      %981 = vmatpush1.msra.mxu0 0.0
      %982 = vmatprep.subr.mxu0 0.0
      %983 = vmatpush1.msra.mxu0 0.0
      %984 = vmatprep.subr.mxu0 0.0
      %985 = vmatpush1.msra.mxu0 0.0
      %986 = vmatprep.subr.mxu0 0.0
      %987 = vmatpush1.msra.mxu0 0.0
      %988 = vmatprep.subr.mxu0 0.0
      %989 = vmatpush1.msra.mxu0 0.0
      %990 = vmatprep.subr.mxu0 0.0
      %991 = vmatpush1.msra.mxu0 0.0
      %992 = vmatprep.subr.mxu0 0.0
      %993 = vmatpush1.msra.mxu0 0.0
      %994 = vmatprep.subr.mxu0 0.0
      %995 = vmatpush1.msra.mxu0 0.0
      %996 = vmatprep.subr.mxu0 0.0
      %997 = vmatpush1.msra.mxu0 0.0
      %998 = vmatprep.subr.mxu0 0.0
      %999 = vmatpush1.msra.mxu0 0.0
      %1000 = vmatprep.subr.mxu0 0.0
      %1001 = vmatpush1.msra.mxu0 0.0
      %1002 = vmatprep.subr.mxu0 0.0
      %1003 = vmatpush1.msra.mxu0 0.0
      %1004 = vmatprep.subr.mxu0 0.0
      %1005 = vmatpush1.msra.mxu0 0.0
      %1006 = vmatprep.subr.mxu0 0.0
      %1007 = vmatpush1.msra.mxu0 0.0
      %1008 = vmatprep.subr.mxu0 0.0
      %1009 = vmatpush1.msra.mxu0 0.0
      %1010 = vmatprep.subr.mxu0 0.0
      %1011 = vmatpush1.msra.mxu0 0.0
      %1012 = vmatprep.subr.mxu0 0.0
      %1013 = vmatpush1.msra.mxu0 0.0
      %1014 = vmatprep.subr.mxu0 0.0
      %1015 = vmatpush1.msra.mxu0 0.0
      %1016 = vmatprep.subr.mxu0 0.0
      %1017 = vmatpush1.msra.mxu0 0.0
      %1018 = vmatprep.subr.mxu0 0.0
      %1019 = vmatpush1.msra.mxu0 0.0
      %1020 = vmatprep.subr.mxu0 0.0
      %1021 = vmatpush1.msra.mxu0 0.0
      %1022 = vmatprep.subr.mxu0 0.0
      %1023 = vmatpush1.msra.mxu0 0.0
      %1024 = vmatprep.subr.mxu0 0.0
      %1025 = vmatpush1.msra.mxu0 0.0
      %1026 = vmatprep.subr.mxu0 0.0
      %1027 = vmatpush1.msra.mxu0 0.0
      %1028 = vmatprep.subr.mxu0 0.0
      %1029 = vmatpush1.msra.mxu0 0.0
      %1030 = vmatprep.subr.mxu0 0.0
      %1031 = vmatpush1.msra.mxu0 0.0
      %1032 = vmatprep.subr.mxu0 0.0
      %1033 = vmatpush1.msra.mxu0 0.0
      %1034 = vmatprep.subr.mxu0 0.0
      %1035 = vmatpush1.msra.mxu0 0.0
      %1036 = vmatprep.mubr.f32.mxu0 0.0
      %1037 = vmatmul.mubr.f32.gmra.mrb[0].mxu0 %v964
      %v1038 = vpop.f32.mrb[0].mxu0
      %v1039 = vadd.f32 %v956, %v1038
      %v1040 = vpop.f32.mrb[0].mxu0
      %1041 = vmatprep.mubr.f32.mxu0 0.0
      %1042 = vmatmul.mubr.f32.gmra.mrb[0].mxu0 %v967
      %v1043 = vpop.f32.mrb[0].mxu0
      %v1044 = vadd.f32 %v961, %v1043
      %v1045 = vpop.f32.mrb[0].mxu0
      %1046 = vdwg.mxu0
      %1047 = vxpose.xlu0.b32.start [1/16] %v1039, 128
      %1048 = vxpose.xlu0.b32.cont [2/16] %v1044, 128
      %1049 = vxpose.xlu0.b32.cont [3/16] 0.0, 128
      %1050 = vxpose.xlu0.b32.cont [4/16] 0.0, 128
      %1051 = vxpose.xlu0.b32.cont [5/16] 0.0, 128
      %1052 = vxpose.xlu0.b32.cont [6/16] 0.0, 128
      %1053 = vxpose.xlu0.b32.cont [7/16] 0.0, 128
      %1054 = vxpose.xlu0.b32.cont [8/16] 0.0, 128
      %1055 = vxpose.xlu0.b32.cont [9/16] 0.0, 128
      %1056 = vxpose.xlu0.b32.cont [10/16] 0.0, 128
      %1057 = vxpose.xlu0.b32.cont [11/16] 0.0, 128
      %1058 = vxpose.xlu0.b32.cont [12/16] 0.0, 128
      %1059 = vxpose.xlu0.b32.cont [13/16] 0.0, 128
      %1060 = vxpose.xlu0.b32.cont [14/16] 0.0, 128
      %1061 = vxpose.xlu0.b32.cont [15/16] 0.0, 128
      %1062 = vxpose.xlu0.b32.end [16/16] 0.0, 128
      %v1063 = vpop.trf.xlu0
      %v1064 = vpop.trf.xlu0
      %v1065 = vpop.trf.xlu0
      %v1066 = vpop.trf.xlu0
      %v1067 = vpop.trf.xlu0
      %v1068 = vpop.trf.xlu0
      %v1069 = vpop.trf.xlu0
      %v1070 = vpop.trf.xlu0
      %v1071 = vpop.trf.xlu0
      %v1072 = vpop.trf.xlu0
      %v1073 = vpop.trf.xlu0
      %v1074 = vpop.trf.xlu0
      %v1075 = vpop.trf.xlu0
      %v1076 = vpop.trf.xlu0
      %v1077 = vpop.trf.xlu0
      %v1078 = vpop.trf.xlu0
      %v1079 = vld [vmem:[%s9] sm:$0xff]
      %v1080 = vld [vmem:[%s9 + $0x8] sm:$0xff]
      %v1081 = vld [vmem:[%s10] sm:$0x1]
      %v1083 = vlaneseq
      %v1084 = vshrl.u32 %v1083, 7
      %v1085 = vsub.s32 0, %v1084
      %v1086 = vrot.slane %v1081, %v1085
      %vm1088 = vcmask 130048
      %v1090 = vsel %vm1088, %v1063, 0
      %v1093 = vsel %vm1088, %v1064, 0
      %1095 = vmatprep.subr.mxu0 0.0
      %1096 = vmatpush1.msra.mxu0 %v1079
      %1097 = vmatprep.subr.mxu0 0.0
      %1098 = vmatpush1.msra.mxu0 %v1080
      %1099 = vmatprep.subr.mxu0 0.0
      %1100 = vmatpush1.msra.mxu0 0.0
      %1101 = vmatprep.subr.mxu0 0.0
      %1102 = vmatpush1.msra.mxu0 0.0
      %1103 = vmatprep.subr.mxu0 0.0
      %1104 = vmatpush1.msra.mxu0 0.0
      %1105 = vmatprep.subr.mxu0 0.0
      %1106 = vmatpush1.msra.mxu0 0.0
      %1107 = vmatprep.subr.mxu0 0.0
      %1108 = vmatpush1.msra.mxu0 0.0
      %1109 = vmatprep.subr.mxu0 0.0
      %1110 = vmatpush1.msra.mxu0 0.0
      %1111 = vmatprep.subr.mxu0 0.0
      %1112 = vmatpush1.msra.mxu0 0.0
      %1113 = vmatprep.subr.mxu0 0.0
      %1114 = vmatpush1.msra.mxu0 0.0
      %1115 = vmatprep.subr.mxu0 0.0
      %1116 = vmatpush1.msra.mxu0 0.0
      %1117 = vmatprep.subr.mxu0 0.0
      %1118 = vmatpush1.msra.mxu0 0.0
      %1119 = vmatprep.subr.mxu0 0.0
      %1120 = vmatpush1.msra.mxu0 0.0
      %1121 = vmatprep.subr.mxu0 0.0
      %1122 = vmatpush1.msra.mxu0 0.0
      %1123 = vmatprep.subr.mxu0 0.0
      %1124 = vmatpush1.msra.mxu0 0.0
      %1125 = vmatprep.subr.mxu0 0.0
      %1126 = vmatpush1.msra.mxu0 0.0
      %1127 = vmatprep.subr.mxu0 0.0
      %1128 = vmatpush1.msra.mxu0 0.0
      %1129 = vmatprep.subr.mxu0 0.0
      %1130 = vmatpush1.msra.mxu0 0.0
      %1131 = vmatprep.subr.mxu0 0.0
      %1132 = vmatpush1.msra.mxu0 0.0
      %1133 = vmatprep.subr.mxu0 0.0
      %1134 = vmatpush1.msra.mxu0 0.0
      %1135 = vmatprep.subr.mxu0 0.0
      %1136 = vmatpush1.msra.mxu0 0.0
      %1137 = vmatprep.subr.mxu0 0.0
      %1138 = vmatpush1.msra.mxu0 0.0
      %1139 = vmatprep.subr.mxu0 0.0
      %1140 = vmatpush1.msra.mxu0 0.0
      %1141 = vmatprep.subr.mxu0 0.0
      %1142 = vmatpush1.msra.mxu0 0.0
      %1143 = vmatprep.subr.mxu0 0.0
      %1144 = vmatpush1.msra.mxu0 0.0
      %1145 = vmatprep.subr.mxu0 0.0
      %1146 = vmatpush1.msra.mxu0 0.0
      %1147 = vmatprep.subr.mxu0 0.0
      %1148 = vmatpush1.msra.mxu0 0.0
      %1149 = vmatprep.subr.mxu0 0.0
      %1150 = vmatpush1.msra.mxu0 0.0
      %1151 = vmatprep.subr.mxu0 0.0
      %1152 = vmatpush1.msra.mxu0 0.0
      %1153 = vmatprep.subr.mxu0 0.0
      %1154 = vmatpush1.msra.mxu0 0.0
      %1155 = vmatprep.subr.mxu0 0.0
      %1156 = vmatpush1.msra.mxu0 0.0
      %1157 = vmatprep.subr.mxu0 0.0
      %1158 = vmatpush1.msra.mxu0 0.0
      %1159 = vmatprep.mubr.f32.mxu0 0.0
      %1160 = vmatmul.mubr.f32.gmra.mrb[0].mxu0 %v1090
      %v1161 = vpop.f32.mrb[0].mxu0
      %v1162 = vadd.f32 %v1086, %v1161
      %v1163 = vpop.f32.mrb[0].mxu0
      %1164 = vmatprep.mubr.f32.mxu0 0.0
      %1165 = vmatmul.mubr.f32.gmra.mrb[0].mxu0 %v1093
      %v1166 = vpop.f32.mrb[0].mxu0
      %v1167 = vadd.f32 %v1086, %v1166
      %v1168 = vpop.f32.mrb[0].mxu0
      %1169 = vdwg.mxu0
      %v1170 = vld [vmem:[%s11] sm:$0xff]
      %v1171 = vld [vmem:[%s11 + $0x8] sm:$0xff]
      %v1172 = vld [vmem:[%s12] sm:$0x1]
      %v1174 = vlaneseq
      %v1175 = vshrl.u32 %v1174, 7
      %v1176 = vsub.s32 0, %v1175
      %v1177 = vrot.slane %v1172, %v1176
      %1179 = vmatprep.subr.mxu0 0.0
      %1180 = vmatpush1.msra.mxu0 %v1170
      %1181 = vmatprep.subr.mxu0 0.0
      %1182 = vmatpush1.msra.mxu0 %v1171
      %1183 = vmatprep.subr.mxu0 0.0
      %1184 = vmatpush1.msra.mxu0 0.0
      %1185 = vmatprep.subr.mxu0 0.0
      %1186 = vmatpush1.msra.mxu0 0.0
      %1187 = vmatprep.subr.mxu0 0.0
      %1188 = vmatpush1.msra.mxu0 0.0
      %1189 = vmatprep.subr.mxu0 0.0
      %1190 = vmatpush1.msra.mxu0 0.0
      %1191 = vmatprep.subr.mxu0 0.0
      %1192 = vmatpush1.msra.mxu0 0.0
      %1193 = vmatprep.subr.mxu0 0.0
      %1194 = vmatpush1.msra.mxu0 0.0
      %1195 = vmatprep.subr.mxu0 0.0
      %1196 = vmatpush1.msra.mxu0 0.0
      %1197 = vmatprep.subr.mxu0 0.0
      %1198 = vmatpush1.msra.mxu0 0.0
      %1199 = vmatprep.subr.mxu0 0.0
      %1200 = vmatpush1.msra.mxu0 0.0
      %1201 = vmatprep.subr.mxu0 0.0
      %1202 = vmatpush1.msra.mxu0 0.0
      %1203 = vmatprep.subr.mxu0 0.0
      %1204 = vmatpush1.msra.mxu0 0.0
      %1205 = vmatprep.subr.mxu0 0.0
      %1206 = vmatpush1.msra.mxu0 0.0
      %1207 = vmatprep.subr.mxu0 0.0
      %1208 = vmatpush1.msra.mxu0 0.0
      %1209 = vmatprep.subr.mxu0 0.0
      %1210 = vmatpush1.msra.mxu0 0.0
      %1211 = vmatprep.subr.mxu0 0.0
      %1212 = vmatpush1.msra.mxu0 0.0
      %1213 = vmatprep.subr.mxu0 0.0
      %1214 = vmatpush1.msra.mxu0 0.0
      %1215 = vmatprep.subr.mxu0 0.0
      %1216 = vmatpush1.msra.mxu0 0.0
      %1217 = vmatprep.subr.mxu0 0.0
      %1218 = vmatpush1.msra.mxu0 0.0
      %1219 = vmatprep.subr.mxu0 0.0
      %1220 = vmatpush1.msra.mxu0 0.0
      %1221 = vmatprep.subr.mxu0 0.0
      %1222 = vmatpush1.msra.mxu0 0.0
      %1223 = vmatprep.subr.mxu0 0.0
      %1224 = vmatpush1.msra.mxu0 0.0
      %1225 = vmatprep.subr.mxu0 0.0
      %1226 = vmatpush1.msra.mxu0 0.0
      %1227 = vmatprep.subr.mxu0 0.0
      %1228 = vmatpush1.msra.mxu0 0.0
      %1229 = vmatprep.subr.mxu0 0.0
      %1230 = vmatpush1.msra.mxu0 0.0
      %1231 = vmatprep.subr.mxu0 0.0
      %1232 = vmatpush1.msra.mxu0 0.0
      %1233 = vmatprep.subr.mxu0 0.0
      %1234 = vmatpush1.msra.mxu0 0.0
      %1235 = vmatprep.subr.mxu0 0.0
      %1236 = vmatpush1.msra.mxu0 0.0
      %1237 = vmatprep.subr.mxu0 0.0
      %1238 = vmatpush1.msra.mxu0 0.0
      %1239 = vmatprep.subr.mxu0 0.0
      %1240 = vmatpush1.msra.mxu0 0.0
      %1241 = vmatprep.subr.mxu0 0.0
      %1242 = vmatpush1.msra.mxu0 0.0
      %1243 = vmatprep.mubr.f32.mxu0 0.0
      %1244 = vmatmul.mubr.f32.gmra.mrb[0].mxu0 %v1090
      %v1245 = vpop.f32.mrb[0].mxu0
      %v1246 = vadd.f32 %v1177, %v1245
      %v1247 = vpop.f32.mrb[0].mxu0
      %1248 = vmatprep.mubr.f32.mxu0 0.0
      %1249 = vmatmul.mubr.f32.gmra.mrb[0].mxu0 %v1093
      %v1250 = vpop.f32.mrb[0].mxu0
      %v1251 = vadd.f32 %v1177, %v1250
      %v1252 = vpop.f32.mrb[0].mxu0
      %1253 = vdwg.mxu0
      %v1254 = vld [vmem:[%s13] sm:$0xff]
      %v1255 = vld [vmem:[%s13 + $0x8] sm:$0xff]
      %v1256 = vld [vmem:[%s14] sm:$0x1]
      %v1258 = vlaneseq
      %v1259 = vshrl.u32 %v1258, 7
      %v1260 = vsub.s32 0, %v1259
      %v1261 = vrot.slane %v1256, %v1260
      %1263 = vmatprep.subr.mxu0 0.0
      %1264 = vmatpush1.msra.mxu0 %v1254
      %1265 = vmatprep.subr.mxu0 0.0
      %1266 = vmatpush1.msra.mxu0 %v1255
      %1267 = vmatprep.subr.mxu0 0.0
      %1268 = vmatpush1.msra.mxu0 0.0
      %1269 = vmatprep.subr.mxu0 0.0
      %1270 = vmatpush1.msra.mxu0 0.0
      %1271 = vmatprep.subr.mxu0 0.0
      %1272 = vmatpush1.msra.mxu0 0.0
      %1273 = vmatprep.subr.mxu0 0.0
      %1274 = vmatpush1.msra.mxu0 0.0
      %1275 = vmatprep.subr.mxu0 0.0
      %1276 = vmatpush1.msra.mxu0 0.0
      %1277 = vmatprep.subr.mxu0 0.0
      %1278 = vmatpush1.msra.mxu0 0.0
      %1279 = vmatprep.subr.mxu0 0.0
      %1280 = vmatpush1.msra.mxu0 0.0
      %1281 = vmatprep.subr.mxu0 0.0
      %1282 = vmatpush1.msra.mxu0 0.0
      %1283 = vmatprep.subr.mxu0 0.0
      %1284 = vmatpush1.msra.mxu0 0.0
      %1285 = vmatprep.subr.mxu0 0.0
      %1286 = vmatpush1.msra.mxu0 0.0
      %1287 = vmatprep.subr.mxu0 0.0
      %1288 = vmatpush1.msra.mxu0 0.0
      %1289 = vmatprep.subr.mxu0 0.0
      %1290 = vmatpush1.msra.mxu0 0.0
      %1291 = vmatprep.subr.mxu0 0.0
      %1292 = vmatpush1.msra.mxu0 0.0
      %1293 = vmatprep.subr.mxu0 0.0
      %1294 = vmatpush1.msra.mxu0 0.0
      %1295 = vmatprep.subr.mxu0 0.0
      %1296 = vmatpush1.msra.mxu0 0.0
      %1297 = vmatprep.subr.mxu0 0.0
      %1298 = vmatpush1.msra.mxu0 0.0
      %1299 = vmatprep.subr.mxu0 0.0
      %1300 = vmatpush1.msra.mxu0 0.0
      %1301 = vmatprep.subr.mxu0 0.0
      %1302 = vmatpush1.msra.mxu0 0.0
      %1303 = vmatprep.subr.mxu0 0.0
      %1304 = vmatpush1.msra.mxu0 0.0
      %1305 = vmatprep.subr.mxu0 0.0
      %1306 = vmatpush1.msra.mxu0 0.0
      %1307 = vmatprep.subr.mxu0 0.0
      %1308 = vmatpush1.msra.mxu0 0.0
      %1309 = vmatprep.subr.mxu0 0.0
      %1310 = vmatpush1.msra.mxu0 0.0
      %1311 = vmatprep.subr.mxu0 0.0
      %1312 = vmatpush1.msra.mxu0 0.0
      %1313 = vmatprep.subr.mxu0 0.0
      %1314 = vmatpush1.msra.mxu0 0.0
      %1315 = vmatprep.subr.mxu0 0.0
      %1316 = vmatpush1.msra.mxu0 0.0
      %1317 = vmatprep.subr.mxu0 0.0
      %1318 = vmatpush1.msra.mxu0 0.0
      %1319 = vmatprep.subr.mxu0 0.0
      %1320 = vmatpush1.msra.mxu0 0.0
      %1321 = vmatprep.subr.mxu0 0.0
      %1322 = vmatpush1.msra.mxu0 0.0
      %1323 = vmatprep.subr.mxu0 0.0
      %1324 = vmatpush1.msra.mxu0 0.0
      %1325 = vmatprep.subr.mxu0 0.0
      %1326 = vmatpush1.msra.mxu0 0.0
      %1327 = vmatprep.mubr.f32.mxu0 0.0
      %1328 = vmatmul.mubr.f32.gmra.mrb[0].mxu0 %v1090
      %v1329 = vpop.f32.mrb[0].mxu0
      %v1330 = vadd.f32 %v1261, %v1329
      %v1331 = vpop.f32.mrb[0].mxu0
      %1332 = vmatprep.mubr.f32.mxu0 0.0
      %1333 = vmatmul.mubr.f32.gmra.mrb[0].mxu0 %v1093
      %v1334 = vpop.f32.mrb[0].mxu0
      %v1335 = vadd.f32 %v1261, %v1334
      %v1336 = vpop.f32.mrb[0].mxu0
      %1337 = vdwg.mxu0
      %v1338 = vmul.f32 %v1162, 0.5
      %v1339 = vmul.f32 %v1167, 0.5
      %v1341 = vsel %vm760, %v1338, 0
      %v1344 = vsel %vm760, %v1339, 0
      %v1347 = vsel %vm760, %v1246, 0
      %v1350 = vsel %vm760, %v1251, 0
      %1352 = vmatprep.subr.mxu0 0.0
      %1353 = vmatpush1.xpose.msra.mxu0 %v1347
      %1354 = vmatprep.subr.mxu0 0.0
      %1355 = vmatpush1.xpose.msra.mxu0 %v1350
      %1356 = vmatprep.subr.mxu0 0.0
      %1357 = vmatpush1.xpose.msra.mxu0 0.0
      %1358 = vmatprep.subr.mxu0 0.0
      %1359 = vmatpush1.xpose.msra.mxu0 0.0
      %1360 = vmatprep.subr.mxu0 0.0
      %1361 = vmatpush1.xpose.msra.mxu0 0.0
      %1362 = vmatprep.subr.mxu0 0.0
      %1363 = vmatpush1.xpose.msra.mxu0 0.0
      %1364 = vmatprep.subr.mxu0 0.0
      %1365 = vmatpush1.xpose.msra.mxu0 0.0
      %1366 = vmatprep.subr.mxu0 0.0
      %1367 = vmatpush1.xpose.msra.mxu0 0.0
      %1368 = vmatprep.subr.mxu0 0.0
      %1369 = vmatpush1.xpose.msra.mxu0 0.0
      %1370 = vmatprep.subr.mxu0 0.0
      %1371 = vmatpush1.xpose.msra.mxu0 0.0
      %1372 = vmatprep.subr.mxu0 0.0
      %1373 = vmatpush1.xpose.msra.mxu0 0.0
      %1374 = vmatprep.subr.mxu0 0.0
      %1375 = vmatpush1.xpose.msra.mxu0 0.0
      %1376 = vmatprep.subr.mxu0 0.0
      %1377 = vmatpush1.xpose.msra.mxu0 0.0
      %1378 = vmatprep.subr.mxu0 0.0
      %1379 = vmatpush1.xpose.msra.mxu0 0.0
      %1380 = vmatprep.subr.mxu0 0.0
      %1381 = vmatpush1.xpose.msra.mxu0 0.0
      %1382 = vmatprep.subr.mxu0 0.0
      %1383 = vmatpush1.xpose.msra.mxu0 0.0
      %1384 = vmatprep.subr.mxu0 0.0
      %1385 = vmatpush1.xpose.msra.mxu0 0.0
      %1386 = vmatprep.subr.mxu0 0.0
      %1387 = vmatpush1.xpose.msra.mxu0 0.0
      %1388 = vmatprep.subr.mxu0 0.0
      %1389 = vmatpush1.xpose.msra.mxu0 0.0
      %1390 = vmatprep.subr.mxu0 0.0
      %1391 = vmatpush1.xpose.msra.mxu0 0.0
      %1392 = vmatprep.subr.mxu0 0.0
      %1393 = vmatpush1.xpose.msra.mxu0 0.0
      %1394 = vmatprep.subr.mxu0 0.0
      %1395 = vmatpush1.xpose.msra.mxu0 0.0
      %1396 = vmatprep.subr.mxu0 0.0
      %1397 = vmatpush1.xpose.msra.mxu0 0.0
      %1398 = vmatprep.subr.mxu0 0.0
      %1399 = vmatpush1.xpose.msra.mxu0 0.0
      %1400 = vmatprep.subr.mxu0 0.0
      %1401 = vmatpush1.xpose.msra.mxu0 0.0
      %1402 = vmatprep.subr.mxu0 0.0
      %1403 = vmatpush1.xpose.msra.mxu0 0.0
      %1404 = vmatprep.subr.mxu0 0.0
      %1405 = vmatpush1.xpose.msra.mxu0 0.0
      %1406 = vmatprep.subr.mxu0 0.0
      %1407 = vmatpush1.xpose.msra.mxu0 0.0
      %1408 = vmatprep.subr.mxu0 0.0
      %1409 = vmatpush1.xpose.msra.mxu0 0.0
      %1410 = vmatprep.subr.mxu0 0.0
      %1411 = vmatpush1.xpose.msra.mxu0 0.0
      %1412 = vmatprep.subr.mxu0 0.0
      %1413 = vmatpush1.xpose.msra.mxu0 0.0
      %1414 = vmatprep.subr.mxu0 0.0
      %1415 = vmatpush1.xpose.msra.mxu0 0.0
      %1416 = vmatprep.mubr.f32.mxu0 0.0
      %1417 = vmatmul.mubr.f32.gmra.mrb[0].mxu0 %v1341
      %v1418 = vpop.f32.mrb[0].mxu0
      %v1419 = vadd.f32 0.0, %v1418
      %v1420 = vpop.f32.mrb[0].mxu0
      %1421 = vmatprep.mubr.f32.mxu0 0.0
      %1422 = vmatmul.mubr.f32.gmra.mrb[0].mxu0 %v1344
      %v1423 = vpop.f32.mrb[0].mxu0
      %v1424 = vadd.f32 0.0, %v1423
      %v1425 = vpop.f32.mrb[0].mxu0
      %1426 = vdwg.mxu0
      %v1427 = vsel %vm1088, %v1419, -inf
      %1428 = vmax.xlane.f32.xlu0 %v1427
      %v1429 = vpop.xlane.xlu0 %1428
      %v1430 = vsel %vm1088, %v1424, -inf
      %1431 = vmax.xlane.f32.xlu0 %v1430
      %v1432 = vpop.xlane.xlu0 %1431
      %v1433 = vsub.f32 %v1419, %v1429
      %v1434 = vsub.f32 %v1424, %v1432
      %v1435 = vmul.f32 %v1433, 1.442695
      %v1436 = vpow.pop %v1435
      %v1437 = vmul.f32 %v1434, 1.442695
      %v1438 = vpow.pop %v1437
      %v1439 = vsel %vm1088, %v1436, 0.0
      %1440 = vadd.xlane.f32.xlu0 %v1439
      %v1441 = vpop.xlane.xlu0 %1440
      %v1442 = vsel %vm1088, %v1438, 0.0
      %1443 = vadd.xlane.f32.xlu0 %v1442
      %v1444 = vpop.xlane.xlu0 %1443
      %v1445 = vrcp.pop %v1441
      %v1446 = vmul.f32 %v1436, %v1445
      %v1447 = vrcp.pop %v1444
      %v1448 = vmul.f32 %v1438, %v1447
      %v1450 = vsel %vm1088, %v1446, 0
      %v1453 = vsel %vm1088, %v1448, 0
      %1455 = vmatprep.subr.mxu0 0.0
      %1456 = vmatpush1.msra.mxu0 %v1330
      %1457 = vmatprep.subr.mxu0 0.0
      %1458 = vmatpush1.msra.mxu0 %v1335
      %1459 = vmatprep.subr.mxu0 0.0
      %1460 = vmatpush1.msra.mxu0 0.0
      %1461 = vmatprep.subr.mxu0 0.0
      %1462 = vmatpush1.msra.mxu0 0.0
      %1463 = vmatprep.subr.mxu0 0.0
      %1464 = vmatpush1.msra.mxu0 0.0
      %1465 = vmatprep.subr.mxu0 0.0
      %1466 = vmatpush1.msra.mxu0 0.0
      %1467 = vmatprep.subr.mxu0 0.0
      %1468 = vmatpush1.msra.mxu0 0.0
      %1469 = vmatprep.subr.mxu0 0.0
      %1470 = vmatpush1.msra.mxu0 0.0
      %1471 = vmatprep.subr.mxu0 0.0
      %1472 = vmatpush1.msra.mxu0 0.0
      %1473 = vmatprep.subr.mxu0 0.0
      %1474 = vmatpush1.msra.mxu0 0.0
      %1475 = vmatprep.subr.mxu0 0.0
      %1476 = vmatpush1.msra.mxu0 0.0
      %1477 = vmatprep.subr.mxu0 0.0
      %1478 = vmatpush1.msra.mxu0 0.0
      %1479 = vmatprep.subr.mxu0 0.0
      %1480 = vmatpush1.msra.mxu0 0.0
      %1481 = vmatprep.subr.mxu0 0.0
      %1482 = vmatpush1.msra.mxu0 0.0
      %1483 = vmatprep.subr.mxu0 0.0
      %1484 = vmatpush1.msra.mxu0 0.0
      %1485 = vmatprep.subr.mxu0 0.0
      %1486 = vmatpush1.msra.mxu0 0.0
      %1487 = vmatprep.subr.mxu0 0.0
      %1488 = vmatpush1.msra.mxu0 0.0
      %1489 = vmatprep.subr.mxu0 0.0
      %1490 = vmatpush1.msra.mxu0 0.0
      %1491 = vmatprep.subr.mxu0 0.0
      %1492 = vmatpush1.msra.mxu0 0.0
      %1493 = vmatprep.subr.mxu0 0.0
      %1494 = vmatpush1.msra.mxu0 0.0
      %1495 = vmatprep.subr.mxu0 0.0
      %1496 = vmatpush1.msra.mxu0 0.0
      %1497 = vmatprep.subr.mxu0 0.0
      %1498 = vmatpush1.msra.mxu0 0.0
      %1499 = vmatprep.subr.mxu0 0.0
      %1500 = vmatpush1.msra.mxu0 0.0
      %1501 = vmatprep.subr.mxu0 0.0
      %1502 = vmatpush1.msra.mxu0 0.0
      %1503 = vmatprep.subr.mxu0 0.0
      %1504 = vmatpush1.msra.mxu0 0.0
      %1505 = vmatprep.subr.mxu0 0.0
      %1506 = vmatpush1.msra.mxu0 0.0
      %1507 = vmatprep.subr.mxu0 0.0
      %1508 = vmatpush1.msra.mxu0 0.0
      %1509 = vmatprep.subr.mxu0 0.0
      %1510 = vmatpush1.msra.mxu0 0.0
      %1511 = vmatprep.subr.mxu0 0.0
      %1512 = vmatpush1.msra.mxu0 0.0
      %1513 = vmatprep.subr.mxu0 0.0
      %1514 = vmatpush1.msra.mxu0 0.0
      %1515 = vmatprep.subr.mxu0 0.0
      %1516 = vmatpush1.msra.mxu0 0.0
      %1517 = vmatprep.subr.mxu0 0.0
      %1518 = vmatpush1.msra.mxu0 0.0
      %1519 = vmatprep.mubr.f32.mxu0 0.0
      %1520 = vmatmul.mubr.f32.gmra.mrb[0].mxu0 %v1450
      %v1521 = vpop.f32.mrb[0].mxu0
      %v1522 = vadd.f32 0.0, %v1521
      %v1523 = vpop.f32.mrb[0].mxu0
      %1524 = vmatprep.mubr.f32.mxu0 0.0
      %1525 = vmatmul.mubr.f32.gmra.mrb[0].mxu0 %v1453
      %v1526 = vpop.f32.mrb[0].mxu0
      %v1527 = vadd.f32 0.0, %v1526
      %v1528 = vpop.f32.mrb[0].mxu0
      %1529 = vdwg.mxu0
      %1530 = vrot.lane.b32.xlu0 %v1338, 124
      %v1531 = vpop.permute.xlu0 %1530
      %1532 = vrot.lane.b32.xlu0 %v1339, 124
      %v1533 = vpop.permute.xlu0 %1532
      %1534 = vrot.lane.b32.xlu0 %v1246, 124
      %v1535 = vpop.permute.xlu0 %1534
      %1536 = vrot.lane.b32.xlu0 %v1251, 124
      %v1537 = vpop.permute.xlu0 %1536
      %v1538 = vsel %vm760, %v1531, 0
      %v1540 = vsel %vm760, %v1533, 0
      %v1542 = vsel %vm760, %v1535, 0
      %v1544 = vsel %vm760, %v1537, 0
      %1546 = vmatprep.subr.mxu0 0.0
      %1547 = vmatpush1.xpose.msra.mxu0 %v1542
      %1548 = vmatprep.subr.mxu0 0.0
      %1549 = vmatpush1.xpose.msra.mxu0 %v1544
      %1550 = vmatprep.subr.mxu0 0.0
      %1551 = vmatpush1.xpose.msra.mxu0 0.0
      %1552 = vmatprep.subr.mxu0 0.0
      %1553 = vmatpush1.xpose.msra.mxu0 0.0
      %1554 = vmatprep.subr.mxu0 0.0
      %1555 = vmatpush1.xpose.msra.mxu0 0.0
      %1556 = vmatprep.subr.mxu0 0.0
      %1557 = vmatpush1.xpose.msra.mxu0 0.0
      %1558 = vmatprep.subr.mxu0 0.0
      %1559 = vmatpush1.xpose.msra.mxu0 0.0
      %1560 = vmatprep.subr.mxu0 0.0
      %1561 = vmatpush1.xpose.msra.mxu0 0.0
      %1562 = vmatprep.subr.mxu0 0.0
      %1563 = vmatpush1.xpose.msra.mxu0 0.0
      %1564 = vmatprep.subr.mxu0 0.0
      %1565 = vmatpush1.xpose.msra.mxu0 0.0
      %1566 = vmatprep.subr.mxu0 0.0
      %1567 = vmatpush1.xpose.msra.mxu0 0.0
      %1568 = vmatprep.subr.mxu0 0.0
      %1569 = vmatpush1.xpose.msra.mxu0 0.0
      %1570 = vmatprep.subr.mxu0 0.0
      %1571 = vmatpush1.xpose.msra.mxu0 0.0
      %1572 = vmatprep.subr.mxu0 0.0
      %1573 = vmatpush1.xpose.msra.mxu0 0.0
      %1574 = vmatprep.subr.mxu0 0.0
      %1575 = vmatpush1.xpose.msra.mxu0 0.0
      %1576 = vmatprep.subr.mxu0 0.0
      %1577 = vmatpush1.xpose.msra.mxu0 0.0
      %1578 = vmatprep.subr.mxu0 0.0
      %1579 = vmatpush1.xpose.msra.mxu0 0.0
      %1580 = vmatprep.subr.mxu0 0.0
      %1581 = vmatpush1.xpose.msra.mxu0 0.0
      %1582 = vmatprep.subr.mxu0 0.0
      %1583 = vmatpush1.xpose.msra.mxu0 0.0
      %1584 = vmatprep.subr.mxu0 0.0
      %1585 = vmatpush1.xpose.msra.mxu0 0.0
      %1586 = vmatprep.subr.mxu0 0.0
      %1587 = vmatpush1.xpose.msra.mxu0 0.0
      %1588 = vmatprep.subr.mxu0 0.0
      %1589 = vmatpush1.xpose.msra.mxu0 0.0
      %1590 = vmatprep.subr.mxu0 0.0
      %1591 = vmatpush1.xpose.msra.mxu0 0.0
      %1592 = vmatprep.subr.mxu0 0.0
      %1593 = vmatpush1.xpose.msra.mxu0 0.0
      %1594 = vmatprep.subr.mxu0 0.0
      %1595 = vmatpush1.xpose.msra.mxu0 0.0
      %1596 = vmatprep.subr.mxu0 0.0
      %1597 = vmatpush1.xpose.msra.mxu0 0.0
      %1598 = vmatprep.subr.mxu0 0.0
      %1599 = vmatpush1.xpose.msra.mxu0 0.0
      %1600 = vmatprep.subr.mxu0 0.0
      %1601 = vmatpush1.xpose.msra.mxu0 0.0
      %1602 = vmatprep.subr.mxu0 0.0
      %1603 = vmatpush1.xpose.msra.mxu0 0.0
      %1604 = vmatprep.subr.mxu0 0.0
      %1605 = vmatpush1.xpose.msra.mxu0 0.0
      %1606 = vmatprep.subr.mxu0 0.0
      %1607 = vmatpush1.xpose.msra.mxu0 0.0
      %1608 = vmatprep.subr.mxu0 0.0
      %1609 = vmatpush1.xpose.msra.mxu0 0.0
      %1610 = vmatprep.mubr.f32.mxu0 0.0
      %1611 = vmatmul.mubr.f32.gmra.mrb[0].mxu0 %v1538
      %v1612 = vpop.f32.mrb[0].mxu0
      %v1613 = vadd.f32 0.0, %v1612
      %v1614 = vpop.f32.mrb[0].mxu0
      %1615 = vmatprep.mubr.f32.mxu0 0.0
      %1616 = vmatmul.mubr.f32.gmra.mrb[0].mxu0 %v1540
      %v1617 = vpop.f32.mrb[0].mxu0
      %v1618 = vadd.f32 0.0, %v1617
      %v1619 = vpop.f32.mrb[0].mxu0
      %1620 = vdwg.mxu0
      %v1621 = vsel %vm1088, %v1613, -inf
      %1622 = vmax.xlane.f32.xlu0 %v1621
      %v1623 = vpop.xlane.xlu0 %1622
      %v1624 = vsel %vm1088, %v1618, -inf
      %1625 = vmax.xlane.f32.xlu0 %v1624
      %v1626 = vpop.xlane.xlu0 %1625
      %v1627 = vsub.f32 %v1613, %v1623
      %v1628 = vsub.f32 %v1618, %v1626
      %v1629 = vmul.f32 %v1627, 1.442695
      %v1630 = vpow.pop %v1629
      %v1631 = vmul.f32 %v1628, 1.442695
      %v1632 = vpow.pop %v1631
      %v1633 = vsel %vm1088, %v1630, 0.0
      %1634 = vadd.xlane.f32.xlu0 %v1633
      %v1635 = vpop.xlane.xlu0 %1634
      %v1636 = vsel %vm1088, %v1632, 0.0
      %1637 = vadd.xlane.f32.xlu0 %v1636
      %v1638 = vpop.xlane.xlu0 %1637
      %v1639 = vrcp.pop %v1635
      %v1640 = vmul.f32 %v1630, %v1639
      %v1641 = vrcp.pop %v1638
      %v1642 = vmul.f32 %v1632, %v1641
      %1645 = vrot.lane.b32.xlu0 %v1330, 124
      %v1646 = vpop.permute.xlu0 %1645
      %1647 = vrot.lane.b32.xlu0 %v1335, 124
      %v1648 = vpop.permute.xlu0 %1647
      %v1652 = vsel %vm1088, %v1640, 0
      %v1655 = vsel %vm1088, %v1642, 0
      %1657 = vmatprep.subr.mxu0 0.0
      %1658 = vmatpush1.msra.mxu0 %v1646
      %1659 = vmatprep.subr.mxu0 0.0
      %1660 = vmatpush1.msra.mxu0 %v1648
      %1661 = vmatprep.subr.mxu0 0.0
      %1662 = vmatpush1.msra.mxu0 0.0
      %1663 = vmatprep.subr.mxu0 0.0
      %1664 = vmatpush1.msra.mxu0 0.0
      %1665 = vmatprep.subr.mxu0 0.0
      %1666 = vmatpush1.msra.mxu0 0.0
      %1667 = vmatprep.subr.mxu0 0.0
      %1668 = vmatpush1.msra.mxu0 0.0
      %1669 = vmatprep.subr.mxu0 0.0
      %1670 = vmatpush1.msra.mxu0 0.0
      %1671 = vmatprep.subr.mxu0 0.0
      %1672 = vmatpush1.msra.mxu0 0.0
      %1673 = vmatprep.subr.mxu0 0.0
      %1674 = vmatpush1.msra.mxu0 0.0
      %1675 = vmatprep.subr.mxu0 0.0
      %1676 = vmatpush1.msra.mxu0 0.0
      %1677 = vmatprep.subr.mxu0 0.0
      %1678 = vmatpush1.msra.mxu0 0.0
      %1679 = vmatprep.subr.mxu0 0.0
      %1680 = vmatpush1.msra.mxu0 0.0
      %1681 = vmatprep.subr.mxu0 0.0
      %1682 = vmatpush1.msra.mxu0 0.0
      %1683 = vmatprep.subr.mxu0 0.0
      %1684 = vmatpush1.msra.mxu0 0.0
      %1685 = vmatprep.subr.mxu0 0.0
      %1686 = vmatpush1.msra.mxu0 0.0
      %1687 = vmatprep.subr.mxu0 0.0
      %1688 = vmatpush1.msra.mxu0 0.0
      %1689 = vmatprep.subr.mxu0 0.0
      %1690 = vmatpush1.msra.mxu0 0.0
      %1691 = vmatprep.subr.mxu0 0.0
      %1692 = vmatpush1.msra.mxu0 0.0
      %1693 = vmatprep.subr.mxu0 0.0
      %1694 = vmatpush1.msra.mxu0 0.0
      %1695 = vmatprep.subr.mxu0 0.0
      %1696 = vmatpush1.msra.mxu0 0.0
      %1697 = vmatprep.subr.mxu0 0.0
      %1698 = vmatpush1.msra.mxu0 0.0
      %1699 = vmatprep.subr.mxu0 0.0
      %1700 = vmatpush1.msra.mxu0 0.0
      %1701 = vmatprep.subr.mxu0 0.0
      %1702 = vmatpush1.msra.mxu0 0.0
      %1703 = vmatprep.subr.mxu0 0.0
      %1704 = vmatpush1.msra.mxu0 0.0
      %1705 = vmatprep.subr.mxu0 0.0
      %1706 = vmatpush1.msra.mxu0 0.0
      %1707 = vmatprep.subr.mxu0 0.0
      %1708 = vmatpush1.msra.mxu0 0.0
      %1709 = vmatprep.subr.mxu0 0.0
      %1710 = vmatpush1.msra.mxu0 0.0
      %1711 = vmatprep.subr.mxu0 0.0
      %1712 = vmatpush1.msra.mxu0 0.0
      %1713 = vmatprep.subr.mxu0 0.0
      %1714 = vmatpush1.msra.mxu0 0.0
      %1715 = vmatprep.subr.mxu0 0.0
      %1716 = vmatpush1.msra.mxu0 0.0
      %1717 = vmatprep.subr.mxu0 0.0
      %1718 = vmatpush1.msra.mxu0 0.0
      %1719 = vmatprep.subr.mxu0 0.0
      %1720 = vmatpush1.msra.mxu0 0.0
      %1721 = vmatprep.mubr.f32.mxu0 0.0
      %1722 = vmatmul.mubr.f32.gmra.mrb[0].mxu0 %v1652
      %v1723 = vpop.f32.mrb[0].mxu0
      %v1724 = vadd.f32 0.0, %v1723
      %v1725 = vpop.f32.mrb[0].mxu0
      %1726 = vmatprep.mubr.f32.mxu0 0.0
      %1727 = vmatmul.mubr.f32.gmra.mrb[0].mxu0 %v1655
      %v1728 = vpop.f32.mrb[0].mxu0
      %v1729 = vadd.f32 0.0, %v1728
      %v1730 = vpop.f32.mrb[0].mxu0
      %1731 = vdwg.mxu0
      %1732 = vrot.lane.b32.xlu0 %v1338, 120
      %v1733 = vpop.permute.xlu0 %1732
      %1734 = vrot.lane.b32.xlu0 %v1339, 120
      %v1735 = vpop.permute.xlu0 %1734
      %1736 = vrot.lane.b32.xlu0 %v1246, 120
      %v1737 = vpop.permute.xlu0 %1736
      %1738 = vrot.lane.b32.xlu0 %v1251, 120
      %v1739 = vpop.permute.xlu0 %1738
      %v1740 = vsel %vm760, %v1733, 0
      %v1742 = vsel %vm760, %v1735, 0
      %v1744 = vsel %vm760, %v1737, 0
      %v1746 = vsel %vm760, %v1739, 0
      %1748 = vmatprep.subr.mxu0 0.0
      %1749 = vmatpush1.xpose.msra.mxu0 %v1744
      %1750 = vmatprep.subr.mxu0 0.0
      %1751 = vmatpush1.xpose.msra.mxu0 %v1746
      %1752 = vmatprep.subr.mxu0 0.0
      %1753 = vmatpush1.xpose.msra.mxu0 0.0
      %1754 = vmatprep.subr.mxu0 0.0
      %1755 = vmatpush1.xpose.msra.mxu0 0.0
      %1756 = vmatprep.subr.mxu0 0.0
      %1757 = vmatpush1.xpose.msra.mxu0 0.0
      %1758 = vmatprep.subr.mxu0 0.0
      %1759 = vmatpush1.xpose.msra.mxu0 0.0
      %1760 = vmatprep.subr.mxu0 0.0
      %1761 = vmatpush1.xpose.msra.mxu0 0.0
      %1762 = vmatprep.subr.mxu0 0.0
      %1763 = vmatpush1.xpose.msra.mxu0 0.0
      %1764 = vmatprep.subr.mxu0 0.0
      %1765 = vmatpush1.xpose.msra.mxu0 0.0
      %1766 = vmatprep.subr.mxu0 0.0
      %1767 = vmatpush1.xpose.msra.mxu0 0.0
      %1768 = vmatprep.subr.mxu0 0.0
      %1769 = vmatpush1.xpose.msra.mxu0 0.0
      %1770 = vmatprep.subr.mxu0 0.0
      %1771 = vmatpush1.xpose.msra.mxu0 0.0
      %1772 = vmatprep.subr.mxu0 0.0
      %1773 = vmatpush1.xpose.msra.mxu0 0.0
      %1774 = vmatprep.subr.mxu0 0.0
      %1775 = vmatpush1.xpose.msra.mxu0 0.0
      %1776 = vmatprep.subr.mxu0 0.0
      %1777 = vmatpush1.xpose.msra.mxu0 0.0
      %1778 = vmatprep.subr.mxu0 0.0
      %1779 = vmatpush1.xpose.msra.mxu0 0.0
      %1780 = vmatprep.subr.mxu0 0.0
      %1781 = vmatpush1.xpose.msra.mxu0 0.0
      %1782 = vmatprep.subr.mxu0 0.0
      %1783 = vmatpush1.xpose.msra.mxu0 0.0
      %1784 = vmatprep.subr.mxu0 0.0
      %1785 = vmatpush1.xpose.msra.mxu0 0.0
      %1786 = vmatprep.subr.mxu0 0.0
      %1787 = vmatpush1.xpose.msra.mxu0 0.0
      %1788 = vmatprep.subr.mxu0 0.0
      %1789 = vmatpush1.xpose.msra.mxu0 0.0
      %1790 = vmatprep.subr.mxu0 0.0
      %1791 = vmatpush1.xpose.msra.mxu0 0.0
      %1792 = vmatprep.subr.mxu0 0.0
      %1793 = vmatpush1.xpose.msra.mxu0 0.0
      %1794 = vmatprep.subr.mxu0 0.0
      %1795 = vmatpush1.xpose.msra.mxu0 0.0
      %1796 = vmatprep.subr.mxu0 0.0
      %1797 = vmatpush1.xpose.msra.mxu0 0.0
      %1798 = vmatprep.subr.mxu0 0.0
      %1799 = vmatpush1.xpose.msra.mxu0 0.0
      %1800 = vmatprep.subr.mxu0 0.0
      %1801 = vmatpush1.xpose.msra.mxu0 0.0
      %1802 = vmatprep.subr.mxu0 0.0
      %1803 = vmatpush1.xpose.msra.mxu0 0.0
      %1804 = vmatprep.subr.mxu0 0.0
      %1805 = vmatpush1.xpose.msra.mxu0 0.0
      %1806 = vmatprep.subr.mxu0 0.0
      %1807 = vmatpush1.xpose.msra.mxu0 0.0
      %1808 = vmatprep.subr.mxu0 0.0
      %1809 = vmatpush1.xpose.msra.mxu0 0.0
      %1810 = vmatprep.subr.mxu0 0.0
      %1811 = vmatpush1.xpose.msra.mxu0 0.0
      %1812 = vmatprep.mubr.f32.mxu0 0.0
      %1813 = vmatmul.mubr.f32.gmra.mrb[0].mxu0 %v1740
      %v1814 = vpop.f32.mrb[0].mxu0
      %v1815 = vadd.f32 0.0, %v1814
      %v1816 = vpop.f32.mrb[0].mxu0
      %1817 = vmatprep.mubr.f32.mxu0 0.0
      %1818 = vmatmul.mubr.f32.gmra.mrb[0].mxu0 %v1742
      %v1819 = vpop.f32.mrb[0].mxu0
      %v1820 = vadd.f32 0.0, %v1819
      %v1821 = vpop.f32.mrb[0].mxu0
      %1822 = vdwg.mxu0
      %v1823 = vsel %vm1088, %v1815, -inf
      %1824 = vmax.xlane.f32.xlu0 %v1823
      %v1825 = vpop.xlane.xlu0 %1824
      %v1826 = vsel %vm1088, %v1820, -inf
      %1827 = vmax.xlane.f32.xlu0 %v1826
      %v1828 = vpop.xlane.xlu0 %1827
      %v1829 = vsub.f32 %v1815, %v1825
      %v1830 = vsub.f32 %v1820, %v1828
      %v1831 = vmul.f32 %v1829, 1.442695
      %v1832 = vpow.pop %v1831
      %v1833 = vmul.f32 %v1830, 1.442695
      %v1834 = vpow.pop %v1833
      %v1835 = vsel %vm1088, %v1832, 0.0
      %1836 = vadd.xlane.f32.xlu0 %v1835
      %v1837 = vpop.xlane.xlu0 %1836
      %v1838 = vsel %vm1088, %v1834, 0.0
      %1839 = vadd.xlane.f32.xlu0 %v1838
      %v1840 = vpop.xlane.xlu0 %1839
      %v1841 = vrcp.pop %v1837
      %v1842 = vmul.f32 %v1832, %v1841
      %v1843 = vrcp.pop %v1840
      %v1844 = vmul.f32 %v1834, %v1843
      %1845 = vrot.lane.b32.xlu0 %v1330, 120
      %v1846 = vpop.permute.xlu0 %1845
      %1847 = vrot.lane.b32.xlu0 %v1335, 120
      %v1848 = vpop.permute.xlu0 %1847
      %v1852 = vsel %vm1088, %v1842, 0
      %v1855 = vsel %vm1088, %v1844, 0
      %1857 = vmatprep.subr.mxu0 0.0
      %1858 = vmatpush1.msra.mxu0 %v1846
      %1859 = vmatprep.subr.mxu0 0.0
      %1860 = vmatpush1.msra.mxu0 %v1848
      %1861 = vmatprep.subr.mxu0 0.0
      %1862 = vmatpush1.msra.mxu0 0.0
      %1863 = vmatprep.subr.mxu0 0.0
      %1864 = vmatpush1.msra.mxu0 0.0
      %1865 = vmatprep.subr.mxu0 0.0
      %1866 = vmatpush1.msra.mxu0 0.0
      %1867 = vmatprep.subr.mxu0 0.0
      %1868 = vmatpush1.msra.mxu0 0.0
      %1869 = vmatprep.subr.mxu0 0.0
      %1870 = vmatpush1.msra.mxu0 0.0
      %1871 = vmatprep.subr.mxu0 0.0
      %1872 = vmatpush1.msra.mxu0 0.0
      %1873 = vmatprep.subr.mxu0 0.0
      %1874 = vmatpush1.msra.mxu0 0.0
      %1875 = vmatprep.subr.mxu0 0.0
      %1876 = vmatpush1.msra.mxu0 0.0
      %1877 = vmatprep.subr.mxu0 0.0
      %1878 = vmatpush1.msra.mxu0 0.0
      %1879 = vmatprep.subr.mxu0 0.0
      %1880 = vmatpush1.msra.mxu0 0.0
      %1881 = vmatprep.subr.mxu0 0.0
      %1882 = vmatpush1.msra.mxu0 0.0
      %1883 = vmatprep.subr.mxu0 0.0
      %1884 = vmatpush1.msra.mxu0 0.0
      %1885 = vmatprep.subr.mxu0 0.0
      %1886 = vmatpush1.msra.mxu0 0.0
      %1887 = vmatprep.subr.mxu0 0.0
      %1888 = vmatpush1.msra.mxu0 0.0
      %1889 = vmatprep.subr.mxu0 0.0
      %1890 = vmatpush1.msra.mxu0 0.0
      %1891 = vmatprep.subr.mxu0 0.0
      %1892 = vmatpush1.msra.mxu0 0.0
      %1893 = vmatprep.subr.mxu0 0.0
      %1894 = vmatpush1.msra.mxu0 0.0
      %1895 = vmatprep.subr.mxu0 0.0
      %1896 = vmatpush1.msra.mxu0 0.0
      %1897 = vmatprep.subr.mxu0 0.0
      %1898 = vmatpush1.msra.mxu0 0.0
      %1899 = vmatprep.subr.mxu0 0.0
      %1900 = vmatpush1.msra.mxu0 0.0
      %1901 = vmatprep.subr.mxu0 0.0
      %1902 = vmatpush1.msra.mxu0 0.0
      %1903 = vmatprep.subr.mxu0 0.0
      %1904 = vmatpush1.msra.mxu0 0.0
      %1905 = vmatprep.subr.mxu0 0.0
      %1906 = vmatpush1.msra.mxu0 0.0
      %1907 = vmatprep.subr.mxu0 0.0
      %1908 = vmatpush1.msra.mxu0 0.0
      %1909 = vmatprep.subr.mxu0 0.0
      %1910 = vmatpush1.msra.mxu0 0.0
      %1911 = vmatprep.subr.mxu0 0.0
      %1912 = vmatpush1.msra.mxu0 0.0
      %1913 = vmatprep.subr.mxu0 0.0
      %1914 = vmatpush1.msra.mxu0 0.0
      %1915 = vmatprep.subr.mxu0 0.0
      %1916 = vmatpush1.msra.mxu0 0.0
      %1917 = vmatprep.subr.mxu0 0.0
      %1918 = vmatpush1.msra.mxu0 0.0
      %1919 = vmatprep.subr.mxu0 0.0
      %1920 = vmatpush1.msra.mxu0 0.0
      %1921 = vmatprep.mubr.f32.mxu0 0.0
      %1922 = vmatmul.mubr.f32.gmra.mrb[0].mxu0 %v1852
      %v1923 = vpop.f32.mrb[0].mxu0
      %v1924 = vadd.f32 0.0, %v1923
      %v1925 = vpop.f32.mrb[0].mxu0
      %1926 = vmatprep.mubr.f32.mxu0 0.0
      %1927 = vmatmul.mubr.f32.gmra.mrb[0].mxu0 %v1855
      %v1928 = vpop.f32.mrb[0].mxu0
      %v1929 = vadd.f32 0.0, %v1928
      %v1930 = vpop.f32.mrb[0].mxu0
      %1931 = vdwg.mxu0
      %1932 = vrot.lane.b32.xlu0 %v1338, 116
      %v1933 = vpop.permute.xlu0 %1932
      %1934 = vrot.lane.b32.xlu0 %v1339, 116
      %v1935 = vpop.permute.xlu0 %1934
      %1936 = vrot.lane.b32.xlu0 %v1246, 116
      %v1937 = vpop.permute.xlu0 %1936
      %1938 = vrot.lane.b32.xlu0 %v1251, 116
      %v1939 = vpop.permute.xlu0 %1938
      %v1940 = vsel %vm760, %v1933, 0
      %v1942 = vsel %vm760, %v1935, 0
      %v1944 = vsel %vm760, %v1937, 0
      %v1946 = vsel %vm760, %v1939, 0
      %1948 = vmatprep.subr.mxu0 0.0
      %1949 = vmatpush1.xpose.msra.mxu0 %v1944
      %1950 = vmatprep.subr.mxu0 0.0
      %1951 = vmatpush1.xpose.msra.mxu0 %v1946
      %1952 = vmatprep.subr.mxu0 0.0
      %1953 = vmatpush1.xpose.msra.mxu0 0.0
      %1954 = vmatprep.subr.mxu0 0.0
      %1955 = vmatpush1.xpose.msra.mxu0 0.0
      %1956 = vmatprep.subr.mxu0 0.0
      %1957 = vmatpush1.xpose.msra.mxu0 0.0
      %1958 = vmatprep.subr.mxu0 0.0
      %1959 = vmatpush1.xpose.msra.mxu0 0.0
      %1960 = vmatprep.subr.mxu0 0.0
      %1961 = vmatpush1.xpose.msra.mxu0 0.0
      %1962 = vmatprep.subr.mxu0 0.0
      %1963 = vmatpush1.xpose.msra.mxu0 0.0
      %1964 = vmatprep.subr.mxu0 0.0
      %1965 = vmatpush1.xpose.msra.mxu0 0.0
      %1966 = vmatprep.subr.mxu0 0.0
      %1967 = vmatpush1.xpose.msra.mxu0 0.0
      %1968 = vmatprep.subr.mxu0 0.0
      %1969 = vmatpush1.xpose.msra.mxu0 0.0
      %1970 = vmatprep.subr.mxu0 0.0
      %1971 = vmatpush1.xpose.msra.mxu0 0.0
      %1972 = vmatprep.subr.mxu0 0.0
      %1973 = vmatpush1.xpose.msra.mxu0 0.0
      %1974 = vmatprep.subr.mxu0 0.0
      %1975 = vmatpush1.xpose.msra.mxu0 0.0
      %1976 = vmatprep.subr.mxu0 0.0
      %1977 = vmatpush1.xpose.msra.mxu0 0.0
      %1978 = vmatprep.subr.mxu0 0.0
      %1979 = vmatpush1.xpose.msra.mxu0 0.0
      %1980 = vmatprep.subr.mxu0 0.0
      %1981 = vmatpush1.xpose.msra.mxu0 0.0
      %1982 = vmatprep.subr.mxu0 0.0
      %1983 = vmatpush1.xpose.msra.mxu0 0.0
      %1984 = vmatprep.subr.mxu0 0.0
      %1985 = vmatpush1.xpose.msra.mxu0 0.0
      %1986 = vmatprep.subr.mxu0 0.0
      %1987 = vmatpush1.xpose.msra.mxu0 0.0
      %1988 = vmatprep.subr.mxu0 0.0
      %1989 = vmatpush1.xpose.msra.mxu0 0.0
      %1990 = vmatprep.subr.mxu0 0.0
      %1991 = vmatpush1.xpose.msra.mxu0 0.0
      %1992 = vmatprep.subr.mxu0 0.0
      %1993 = vmatpush1.xpose.msra.mxu0 0.0
      %1994 = vmatprep.subr.mxu0 0.0
      %1995 = vmatpush1.xpose.msra.mxu0 0.0
      %1996 = vmatprep.subr.mxu0 0.0
      %1997 = vmatpush1.xpose.msra.mxu0 0.0
      %1998 = vmatprep.subr.mxu0 0.0
      %1999 = vmatpush1.xpose.msra.mxu0 0.0
      %2000 = vmatprep.subr.mxu0 0.0
      %2001 = vmatpush1.xpose.msra.mxu0 0.0
      %2002 = vmatprep.subr.mxu0 0.0
      %2003 = vmatpush1.xpose.msra.mxu0 0.0
      %2004 = vmatprep.subr.mxu0 0.0
      %2005 = vmatpush1.xpose.msra.mxu0 0.0
      %2006 = vmatprep.subr.mxu0 0.0
      %2007 = vmatpush1.xpose.msra.mxu0 0.0
      %2008 = vmatprep.subr.mxu0 0.0
      %2009 = vmatpush1.xpose.msra.mxu0 0.0
      %2010 = vmatprep.subr.mxu0 0.0
      %2011 = vmatpush1.xpose.msra.mxu0 0.0
      %2012 = vmatprep.mubr.f32.mxu0 0.0
      %2013 = vmatmul.mubr.f32.gmra.mrb[0].mxu0 %v1940
      %v2014 = vpop.f32.mrb[0].mxu0
      %v2015 = vadd.f32 0.0, %v2014
      %v2016 = vpop.f32.mrb[0].mxu0
      %2017 = vmatprep.mubr.f32.mxu0 0.0
      %2018 = vmatmul.mubr.f32.gmra.mrb[0].mxu0 %v1942
      %v2019 = vpop.f32.mrb[0].mxu0
      %v2020 = vadd.f32 0.0, %v2019
      %v2021 = vpop.f32.mrb[0].mxu0
      %2022 = vdwg.mxu0
      %v2023 = vsel %vm1088, %v2015, -inf
      %2024 = vmax.xlane.f32.xlu0 %v2023
      %v2025 = vpop.xlane.xlu0 %2024
      %v2026 = vsel %vm1088, %v2020, -inf
      %2027 = vmax.xlane.f32.xlu0 %v2026
      %v2028 = vpop.xlane.xlu0 %2027
      %v2029 = vsub.f32 %v2015, %v2025
      %v2030 = vsub.f32 %v2020, %v2028
      %v2031 = vmul.f32 %v2029, 1.442695
      %v2032 = vpow.pop %v2031
      %v2033 = vmul.f32 %v2030, 1.442695
      %v2034 = vpow.pop %v2033
      %v2035 = vsel %vm1088, %v2032, 0.0
      %2036 = vadd.xlane.f32.xlu0 %v2035
      %v2037 = vpop.xlane.xlu0 %2036
      %v2038 = vsel %vm1088, %v2034, 0.0
      %2039 = vadd.xlane.f32.xlu0 %v2038
      %v2040 = vpop.xlane.xlu0 %2039
      %v2041 = vrcp.pop %v2037
      %v2042 = vmul.f32 %v2032, %v2041
      %v2043 = vrcp.pop %v2040
      %v2044 = vmul.f32 %v2034, %v2043
      %2045 = vrot.lane.b32.xlu0 %v1330, 116
      %v2046 = vpop.permute.xlu0 %2045
      %2047 = vrot.lane.b32.xlu0 %v1335, 116
      %v2048 = vpop.permute.xlu0 %2047
      %v2052 = vsel %vm1088, %v2042, 0
      %v2055 = vsel %vm1088, %v2044, 0
      %2057 = vmatprep.subr.mxu0 0.0
      %2058 = vmatpush1.msra.mxu0 %v2046
      %2059 = vmatprep.subr.mxu0 0.0
      %2060 = vmatpush1.msra.mxu0 %v2048
      %2061 = vmatprep.subr.mxu0 0.0
      %2062 = vmatpush1.msra.mxu0 0.0
      %2063 = vmatprep.subr.mxu0 0.0
      %2064 = vmatpush1.msra.mxu0 0.0
      %2065 = vmatprep.subr.mxu0 0.0
      %2066 = vmatpush1.msra.mxu0 0.0
      %2067 = vmatprep.subr.mxu0 0.0
      %2068 = vmatpush1.msra.mxu0 0.0
      %2069 = vmatprep.subr.mxu0 0.0
      %2070 = vmatpush1.msra.mxu0 0.0
      %2071 = vmatprep.subr.mxu0 0.0
      %2072 = vmatpush1.msra.mxu0 0.0
      %2073 = vmatprep.subr.mxu0 0.0
      %2074 = vmatpush1.msra.mxu0 0.0
      %2075 = vmatprep.subr.mxu0 0.0
      %2076 = vmatpush1.msra.mxu0 0.0
      %2077 = vmatprep.subr.mxu0 0.0
      %2078 = vmatpush1.msra.mxu0 0.0
      %2079 = vmatprep.subr.mxu0 0.0
      %2080 = vmatpush1.msra.mxu0 0.0
      %2081 = vmatprep.subr.mxu0 0.0
      %2082 = vmatpush1.msra.mxu0 0.0
      %2083 = vmatprep.subr.mxu0 0.0
      %2084 = vmatpush1.msra.mxu0 0.0
      %2085 = vmatprep.subr.mxu0 0.0
      %2086 = vmatpush1.msra.mxu0 0.0
      %2087 = vmatprep.subr.mxu0 0.0
      %2088 = vmatpush1.msra.mxu0 0.0
      %2089 = vmatprep.subr.mxu0 0.0
      %2090 = vmatpush1.msra.mxu0 0.0
      %2091 = vmatprep.subr.mxu0 0.0
      %2092 = vmatpush1.msra.mxu0 0.0
      %2093 = vmatprep.subr.mxu0 0.0
      %2094 = vmatpush1.msra.mxu0 0.0
      %2095 = vmatprep.subr.mxu0 0.0
      %2096 = vmatpush1.msra.mxu0 0.0
      %2097 = vmatprep.subr.mxu0 0.0
      %2098 = vmatpush1.msra.mxu0 0.0
      %2099 = vmatprep.subr.mxu0 0.0
      %2100 = vmatpush1.msra.mxu0 0.0
      %2101 = vmatprep.subr.mxu0 0.0
      %2102 = vmatpush1.msra.mxu0 0.0
      %2103 = vmatprep.subr.mxu0 0.0
      %2104 = vmatpush1.msra.mxu0 0.0
      %2105 = vmatprep.subr.mxu0 0.0
      %2106 = vmatpush1.msra.mxu0 0.0
      %2107 = vmatprep.subr.mxu0 0.0
      %2108 = vmatpush1.msra.mxu0 0.0
      %2109 = vmatprep.subr.mxu0 0.0
      %2110 = vmatpush1.msra.mxu0 0.0
      %2111 = vmatprep.subr.mxu0 0.0
      %2112 = vmatpush1.msra.mxu0 0.0
      %2113 = vmatprep.subr.mxu0 0.0
      %2114 = vmatpush1.msra.mxu0 0.0
      %2115 = vmatprep.subr.mxu0 0.0
      %2116 = vmatpush1.msra.mxu0 0.0
      %2117 = vmatprep.subr.mxu0 0.0
      %2118 = vmatpush1.msra.mxu0 0.0
      %2119 = vmatprep.subr.mxu0 0.0
      %2120 = vmatpush1.msra.mxu0 0.0
      %2121 = vmatprep.mubr.f32.mxu0 0.0
      %2122 = vmatmul.mubr.f32.gmra.mrb[0].mxu0 %v2052
      %v2123 = vpop.f32.mrb[0].mxu0
      %v2124 = vadd.f32 0.0, %v2123
      %v2125 = vpop.f32.mrb[0].mxu0
      %2126 = vmatprep.mubr.f32.mxu0 0.0
      %2127 = vmatmul.mubr.f32.gmra.mrb[0].mxu0 %v2055
      %v2128 = vpop.f32.mrb[0].mxu0
      %v2129 = vadd.f32 0.0, %v2128
      %v2130 = vpop.f32.mrb[0].mxu0
      %2131 = vdwg.mxu0
      %2134 = vrot.lane.b32.xlu0 %v1724, 4
      %v2135 = vpop.permute.xlu0 %2134
      %2136 = vrot.lane.b32.xlu0 %v1729, 4
      %v2137 = vpop.permute.xlu0 %2136
      %2142 = vrot.lane.b32.xlu0 %v1924, 8
      %v2143 = vpop.permute.xlu0 %2142
      %2144 = vrot.lane.b32.xlu0 %v1929, 8
      %v2145 = vpop.permute.xlu0 %2144
      %2150 = vrot.lane.b32.xlu0 %v2124, 12
      %v2151 = vpop.permute.xlu0 %2150
      %2152 = vrot.lane.b32.xlu0 %v2129, 12
      %v2153 = vpop.permute.xlu0 %2152
      %v2156 = vsel %vm760, %v1522, %v2135
      %v2157 = vsel %vm760, %v1527, %v2137
      %vm2158 = vcmask 64512
      %v2159 = vsel %vm2158, %v2156, %v2143
      %v2160 = vsel %vm2158, %v2157, %v2145
      %vm2161 = vcmask 97280
      %v2162 = vsel %vm2161, %v2159, %v2151
      %v2163 = vsel %vm2161, %v2160, %v2153
      %v2164 = vld [vmem:[%s15] sm:$0xff]
      %v2165 = vld [vmem:[%s15 + $0x8] sm:$0xff]
      %v2166 = vld [vmem:[%s16] sm:$0x1]
      %v2168 = vlaneseq
      %v2169 = vshrl.u32 %v2168, 7
      %v2170 = vsub.s32 0, %v2169
      %v2171 = vrot.slane %v2166, %v2170
      %v2174 = vsel %vm1088, %v2162, 0
      %v2177 = vsel %vm1088, %v2163, 0
      %2179 = vmatprep.subr.mxu0 0.0
      %2180 = vmatpush1.msra.mxu0 %v2164
      %2181 = vmatprep.subr.mxu0 0.0
      %2182 = vmatpush1.msra.mxu0 %v2165
      %2183 = vmatprep.subr.mxu0 0.0
      %2184 = vmatpush1.msra.mxu0 0.0
      %2185 = vmatprep.subr.mxu0 0.0
      %2186 = vmatpush1.msra.mxu0 0.0
      %2187 = vmatprep.subr.mxu0 0.0
      %2188 = vmatpush1.msra.mxu0 0.0
      %2189 = vmatprep.subr.mxu0 0.0
      %2190 = vmatpush1.msra.mxu0 0.0
      %2191 = vmatprep.subr.mxu0 0.0
      %2192 = vmatpush1.msra.mxu0 0.0
      %2193 = vmatprep.subr.mxu0 0.0
      %2194 = vmatpush1.msra.mxu0 0.0
      %2195 = vmatprep.subr.mxu0 0.0
      %2196 = vmatpush1.msra.mxu0 0.0
      %2197 = vmatprep.subr.mxu0 0.0
      %2198 = vmatpush1.msra.mxu0 0.0
      %2199 = vmatprep.subr.mxu0 0.0
      %2200 = vmatpush1.msra.mxu0 0.0
      %2201 = vmatprep.subr.mxu0 0.0
      %2202 = vmatpush1.msra.mxu0 0.0
      %2203 = vmatprep.subr.mxu0 0.0
      %2204 = vmatpush1.msra.mxu0 0.0
      %2205 = vmatprep.subr.mxu0 0.0
      %2206 = vmatpush1.msra.mxu0 0.0
      %2207 = vmatprep.subr.mxu0 0.0
      %2208 = vmatpush1.msra.mxu0 0.0
      %2209 = vmatprep.subr.mxu0 0.0
      %2210 = vmatpush1.msra.mxu0 0.0
      %2211 = vmatprep.subr.mxu0 0.0
      %2212 = vmatpush1.msra.mxu0 0.0
      %2213 = vmatprep.subr.mxu0 0.0
      %2214 = vmatpush1.msra.mxu0 0.0
      %2215 = vmatprep.subr.mxu0 0.0
      %2216 = vmatpush1.msra.mxu0 0.0
      %2217 = vmatprep.subr.mxu0 0.0
      %2218 = vmatpush1.msra.mxu0 0.0
      %2219 = vmatprep.subr.mxu0 0.0
      %2220 = vmatpush1.msra.mxu0 0.0
      %2221 = vmatprep.subr.mxu0 0.0
      %2222 = vmatpush1.msra.mxu0 0.0
      %2223 = vmatprep.subr.mxu0 0.0
      %2224 = vmatpush1.msra.mxu0 0.0
      %2225 = vmatprep.subr.mxu0 0.0
      %2226 = vmatpush1.msra.mxu0 0.0
      %2227 = vmatprep.subr.mxu0 0.0
      %2228 = vmatpush1.msra.mxu0 0.0
      %2229 = vmatprep.subr.mxu0 0.0
      %2230 = vmatpush1.msra.mxu0 0.0
      %2231 = vmatprep.subr.mxu0 0.0
      %2232 = vmatpush1.msra.mxu0 0.0
      %2233 = vmatprep.subr.mxu0 0.0
      %2234 = vmatpush1.msra.mxu0 0.0
      %2235 = vmatprep.subr.mxu0 0.0
      %2236 = vmatpush1.msra.mxu0 0.0
      %2237 = vmatprep.subr.mxu0 0.0
      %2238 = vmatpush1.msra.mxu0 0.0
      %2239 = vmatprep.subr.mxu0 0.0
      %2240 = vmatpush1.msra.mxu0 0.0
      %2241 = vmatprep.subr.mxu0 0.0
      %2242 = vmatpush1.msra.mxu0 0.0
      %2243 = vmatprep.mubr.f32.mxu0 0.0
      %2244 = vmatmul.mubr.f32.gmra.mrb[0].mxu0 %v2174
      %v2245 = vpop.f32.mrb[0].mxu0
      %v2246 = vadd.f32 %v2171, %v2245
      %v2247 = vpop.f32.mrb[0].mxu0
      %2248 = vmatprep.mubr.f32.mxu0 0.0
      %2249 = vmatmul.mubr.f32.gmra.mrb[0].mxu0 %v2177
      %v2250 = vpop.f32.mrb[0].mxu0
      %v2251 = vadd.f32 %v2171, %v2250
      %v2252 = vpop.f32.mrb[0].mxu0
      %2253 = vdwg.mxu0
      %2254 = vxpose.xlu0.b32.start [1/16] %v2246, 128
      %2255 = vxpose.xlu0.b32.cont [2/16] %v2251, 128
      %2256 = vxpose.xlu0.b32.cont [3/16] 0.0, 128
      %2257 = vxpose.xlu0.b32.cont [4/16] 0.0, 128
      %2258 = vxpose.xlu0.b32.cont [5/16] 0.0, 128
      %2259 = vxpose.xlu0.b32.cont [6/16] 0.0, 128
      %2260 = vxpose.xlu0.b32.cont [7/16] 0.0, 128
      %2261 = vxpose.xlu0.b32.cont [8/16] 0.0, 128
      %2262 = vxpose.xlu0.b32.cont [9/16] 0.0, 128
      %2263 = vxpose.xlu0.b32.cont [10/16] 0.0, 128
      %2264 = vxpose.xlu0.b32.cont [11/16] 0.0, 128
      %2265 = vxpose.xlu0.b32.cont [12/16] 0.0, 128
      %2266 = vxpose.xlu0.b32.cont [13/16] 0.0, 128
      %2267 = vxpose.xlu0.b32.cont [14/16] 0.0, 128
      %2268 = vxpose.xlu0.b32.cont [15/16] 0.0, 128
      %2269 = vxpose.xlu0.b32.end [16/16] 0.0, 128
      %v2270 = vpop.trf.xlu0
      %v2271 = vpop.trf.xlu0
      %v2272 = vpop.trf.xlu0
      %v2273 = vpop.trf.xlu0
      %v2274 = vpop.trf.xlu0
      %v2275 = vpop.trf.xlu0
      %v2276 = vpop.trf.xlu0
      %v2277 = vpop.trf.xlu0
      %v2278 = vpop.trf.xlu0
      %v2279 = vpop.trf.xlu0
      %v2280 = vpop.trf.xlu0
      %v2281 = vpop.trf.xlu0
      %v2282 = vpop.trf.xlu0
      %v2283 = vpop.trf.xlu0
      %v2284 = vpop.trf.xlu0
      %v2285 = vpop.trf.xlu0
      %2286 = vst.msk [vmem:[%s742] sm:$0xff] %vm1088, %v2270
      %2287 = vst.msk [vmem:[%s742 + $0x8] sm:$0xff] %vm1088, %v2271
      %v2288 = vld [vmem:[%s17] sm:$0xff]
      %v2289 = vld [vmem:[%s17 + $0x8] sm:$0xff]
      %v2290 = vld [vmem:[%s17 + $0x10] sm:$0xff]
      %v2291 = vld [vmem:[%s17 + $0x18] sm:$0xff]
      %v2292 = vld [vmem:[%s17 + $0x20] sm:$0xff]
      %v2293 = vld [vmem:[%s17 + $0x28] sm:$0xff]
      %v2294 = vld [vmem:[%s17 + $0x30] sm:$0xff]
      %v2295 = vld [vmem:[%s17 + $0x38] sm:$0xff]
      %v2296 = vld [vmem:[%s17 + $0x40] sm:$0xff]
      %v2297 = vld [vmem:[%s17 + $0x48] sm:$0xff]
      %v2298 = vld [vmem:[%s17 + $0x50] sm:$0xff]
      %v2299 = vld [vmem:[%s17 + $0x58] sm:$0xff]
      %v2300 = vld [vmem:[%s17 + $0x60] sm:$0xff]
      %v2301 = vld [vmem:[%s17 + $0x68] sm:$0xff]
      %v2302 = vld [vmem:[%s17 + $0x70] sm:$0xff]
      %v2303 = vld [vmem:[%s17 + $0x78] sm:$0xff]
      %v2304 = vld [vmem:[%s17 + $0x80] sm:$0xff]
      %v2305 = vld [vmem:[%s17 + $0x88] sm:$0xff]
      %v2306 = vld [vmem:[%s17 + $0x90] sm:$0xff]
      %v2307 = vld [vmem:[%s17 + $0x98] sm:$0xff]
      %v2308 = vld [vmem:[%s17 + $0xa0] sm:$0xff]
      %v2309 = vld [vmem:[%s17 + $0xa8] sm:$0xff]
      %v2310 = vld [vmem:[%s17 + $0xb0] sm:$0xff]
      %v2311 = vld [vmem:[%s17 + $0xb8] sm:$0xff]
      %v2312 = vld [vmem:[%s17 + $0xc0] sm:$0xff]
      %v2313 = vld [vmem:[%s17 + $0xc8] sm:$0xff]
      %v2314 = vld [vmem:[%s17 + $0xd0] sm:$0xff]
      %v2315 = vld [vmem:[%s17 + $0xd8] sm:$0xff]
      %v2316 = vld [vmem:[%s17 + $0xe0] sm:$0xff]
      %v2317 = vld [vmem:[%s17 + $0xe8] sm:$0xff]
      %v2318 = vld [vmem:[%s17 + $0xf0] sm:$0xff]
      %v2319 = vld [vmem:[%s17 + $0xf8] sm:$0xff]
      %v2320 = vld [vmem:[%s18] sm:$0xff]
      %v2321 = vld [vmem:[%s18 + $0x8] sm:$0xff]
      %v2323 = vsel %vm1088, %v2270, 0
      %v2326 = vsel %vm1088, %v2271, 0
      %2328 = vmatprep.subr.mxu0 0.0
      %2329 = vmatpush1.msra.mxu0 %v2320
      %2330 = vmatprep.subr.mxu0 0.0
      %2331 = vmatpush1.msra.mxu0 %v2321
      %2332 = vmatprep.subr.mxu0 0.0
      %2333 = vmatpush1.msra.mxu0 0.0
      %2334 = vmatprep.subr.mxu0 0.0
      %2335 = vmatpush1.msra.mxu0 0.0
      %2336 = vmatprep.subr.mxu0 0.0
      %2337 = vmatpush1.msra.mxu0 0.0
      %2338 = vmatprep.subr.mxu0 0.0
      %2339 = vmatpush1.msra.mxu0 0.0
      %2340 = vmatprep.subr.mxu0 0.0
      %2341 = vmatpush1.msra.mxu0 0.0
      %2342 = vmatprep.subr.mxu0 0.0
      %2343 = vmatpush1.msra.mxu0 0.0
      %2344 = vmatprep.subr.mxu0 0.0
      %2345 = vmatpush1.msra.mxu0 0.0
      %2346 = vmatprep.subr.mxu0 0.0
      %2347 = vmatpush1.msra.mxu0 0.0
      %2348 = vmatprep.subr.mxu0 0.0
      %2349 = vmatpush1.msra.mxu0 0.0
      %2350 = vmatprep.subr.mxu0 0.0
      %2351 = vmatpush1.msra.mxu0 0.0
      %2352 = vmatprep.subr.mxu0 0.0
      %2353 = vmatpush1.msra.mxu0 0.0
      %2354 = vmatprep.subr.mxu0 0.0
      %2355 = vmatpush1.msra.mxu0 0.0
      %2356 = vmatprep.subr.mxu0 0.0
      %2357 = vmatpush1.msra.mxu0 0.0
      %2358 = vmatprep.subr.mxu0 0.0
      %2359 = vmatpush1.msra.mxu0 0.0
      %2360 = vmatprep.subr.mxu0 0.0
      %2361 = vmatpush1.msra.mxu0 0.0
      %2362 = vmatprep.subr.mxu0 0.0
      %2363 = vmatpush1.msra.mxu0 0.0
      %2364 = vmatprep.subr.mxu0 0.0
      %2365 = vmatpush1.msra.mxu0 0.0
      %2366 = vmatprep.subr.mxu0 0.0
      %2367 = vmatpush1.msra.mxu0 0.0
      %2368 = vmatprep.subr.mxu0 0.0
      %2369 = vmatpush1.msra.mxu0 0.0
      %2370 = vmatprep.subr.mxu0 0.0
      %2371 = vmatpush1.msra.mxu0 0.0
      %2372 = vmatprep.subr.mxu0 0.0
      %2373 = vmatpush1.msra.mxu0 0.0
      %2374 = vmatprep.subr.mxu0 0.0
      %2375 = vmatpush1.msra.mxu0 0.0
      %2376 = vmatprep.subr.mxu0 0.0
      %2377 = vmatpush1.msra.mxu0 0.0
      %2378 = vmatprep.subr.mxu0 0.0
      %2379 = vmatpush1.msra.mxu0 0.0
      %2380 = vmatprep.subr.mxu0 0.0
      %2381 = vmatpush1.msra.mxu0 0.0
      %2382 = vmatprep.subr.mxu0 0.0
      %2383 = vmatpush1.msra.mxu0 0.0
      %2384 = vmatprep.subr.mxu0 0.0
      %2385 = vmatpush1.msra.mxu0 0.0
      %2386 = vmatprep.subr.mxu0 0.0
      %2387 = vmatpush1.msra.mxu0 0.0
      %2388 = vmatprep.subr.mxu0 0.0
      %2389 = vmatpush1.msra.mxu0 0.0
      %2390 = vmatprep.subr.mxu0 0.0
      %2391 = vmatpush1.msra.mxu0 0.0
      %2392 = vmatprep.mubr.f32.mxu0 0.0
      %2393 = vmatmul.mubr.f32.gmra.mrb[0].mxu0 %v2323
      %v2394 = vpop.f32.mrb[0].mxu0
      %v2395 = vadd.f32 0.0, %v2394
      %v2396 = vpop.f32.mrb[0].mxu0
      %2397 = vmatprep.mubr.f32.mxu0 0.0
      %2398 = vmatmul.mubr.f32.gmra.mrb[0].mxu0 %v2326
      %v2399 = vpop.f32.mrb[0].mxu0
      %v2400 = vadd.f32 0.0, %v2399
      %v2401 = vpop.f32.mrb[0].mxu0
      %2402 = vdwg.mxu0
      %v2403 = vadd.f32 %v940, %v2395
      %v2404 = vadd.f32 %v945, %v2400
      %vm2405 = vcmask 523264
      %2406 = vst.msk [vmem:[%s737] sm:$0xff] %vm2405, %v2403
      %2407 = vst.msk [vmem:[%s737 + $0x8] sm:$0xff] %vm2405, %v2404
      %v2408 = vld [vmem:[%s19] sm:$0xff]
      %v2409 = vld [vmem:[%s19 + $0x8] sm:$0xff]
      %v2410 = vld [vmem:[%s19 + $0x10] sm:$0xff]
      %v2411 = vld [vmem:[%s19 + $0x18] sm:$0xff]
      %v2412 = vld [vmem:[%s19 + $0x20] sm:$0xff]
      %v2413 = vld [vmem:[%s19 + $0x28] sm:$0xff]
      %v2414 = vld [vmem:[%s19 + $0x30] sm:$0xff]
      %v2415 = vld [vmem:[%s19 + $0x38] sm:$0xff]
      %v2417 = vsel %vm2405, %v2403, 0
      %v2420 = vsel %vm2405, %v2404, 0
      %2422 = vmatprep.subr.mxu0 0.0
      %2423 = vmatpush1.msra.mxu0 %v2408
      %2424 = vmatprep.subr.mxu0 0.0
      %2425 = vmatpush1.msra.mxu0 %v2409
      %2426 = vmatprep.subr.mxu0 0.0
      %2427 = vmatpush1.msra.mxu0 %v2410
      %2428 = vmatprep.subr.mxu0 0.0
      %2429 = vmatpush1.msra.mxu0 %v2411
      %2430 = vmatprep.subr.mxu0 0.0
      %2431 = vmatpush1.msra.mxu0 %v2412
      %2432 = vmatprep.subr.mxu0 0.0
      %2433 = vmatpush1.msra.mxu0 %v2413
      %2434 = vmatprep.subr.mxu0 0.0
      %2435 = vmatpush1.msra.mxu0 %v2414
      %2436 = vmatprep.subr.mxu0 0.0
      %2437 = vmatpush1.msra.mxu0 %v2415
      %2438 = vmatprep.subr.mxu0 0.0
      %2439 = vmatpush1.msra.mxu0 0.0
      %2440 = vmatprep.subr.mxu0 0.0
      %2441 = vmatpush1.msra.mxu0 0.0
      %2442 = vmatprep.subr.mxu0 0.0
      %2443 = vmatpush1.msra.mxu0 0.0
      %2444 = vmatprep.subr.mxu0 0.0
      %2445 = vmatpush1.msra.mxu0 0.0
      %2446 = vmatprep.subr.mxu0 0.0
      %2447 = vmatpush1.msra.mxu0 0.0
      %2448 = vmatprep.subr.mxu0 0.0
      %2449 = vmatpush1.msra.mxu0 0.0
      %2450 = vmatprep.subr.mxu0 0.0
      %2451 = vmatpush1.msra.mxu0 0.0
      %2452 = vmatprep.subr.mxu0 0.0
      %2453 = vmatpush1.msra.mxu0 0.0
      %2454 = vmatprep.subr.mxu0 0.0
      %2455 = vmatpush1.msra.mxu0 0.0
      %2456 = vmatprep.subr.mxu0 0.0
      %2457 = vmatpush1.msra.mxu0 0.0
      %2458 = vmatprep.subr.mxu0 0.0
      %2459 = vmatpush1.msra.mxu0 0.0
      %2460 = vmatprep.subr.mxu0 0.0
      %2461 = vmatpush1.msra.mxu0 0.0
      %2462 = vmatprep.subr.mxu0 0.0
      %2463 = vmatpush1.msra.mxu0 0.0
      %2464 = vmatprep.subr.mxu0 0.0
      %2465 = vmatpush1.msra.mxu0 0.0
      %2466 = vmatprep.subr.mxu0 0.0
      %2467 = vmatpush1.msra.mxu0 0.0
      %2468 = vmatprep.subr.mxu0 0.0
      %2469 = vmatpush1.msra.mxu0 0.0
      %2470 = vmatprep.subr.mxu0 0.0
      %2471 = vmatpush1.msra.mxu0 0.0
      %2472 = vmatprep.subr.mxu0 0.0
      %2473 = vmatpush1.msra.mxu0 0.0
      %2474 = vmatprep.subr.mxu0 0.0
      %2475 = vmatpush1.msra.mxu0 0.0
      %2476 = vmatprep.subr.mxu0 0.0
      %2477 = vmatpush1.msra.mxu0 0.0
      %2478 = vmatprep.subr.mxu0 0.0
      %2479 = vmatpush1.msra.mxu0 0.0
      %2480 = vmatprep.subr.mxu0 0.0
      %2481 = vmatpush1.msra.mxu0 0.0
      %2482 = vmatprep.subr.mxu0 0.0
      %2483 = vmatpush1.msra.mxu0 0.0
      %2484 = vmatprep.subr.mxu0 0.0
      %2485 = vmatpush1.msra.mxu0 0.0
      %2486 = vmatprep.mubr.f32.mxu0 0.0
      %2487 = vmatmul.mubr.f32.gmra.mrb[0].mxu0 %v2417
      %v2488 = vpop.f32.mrb[0].mxu0
      %v2489 = vadd.f32 0.0, %v2488
      %v2490 = vpop.f32.mrb[0].mxu0
      %2491 = vmatprep.mubr.f32.mxu0 0.0
      %2492 = vmatmul.mubr.f32.gmra.mrb[0].mxu0 %v2420
      %v2493 = vpop.f32.mrb[0].mxu0
      %v2494 = vadd.f32 0.0, %v2493
      %v2495 = vpop.f32.mrb[0].mxu0
      %2496 = vdwg.mxu0
      %2497 = vmatprep.subr.mxu0 0.0
      %2498 = vmatpush1.msra.mxu0 %v2288
      %2499 = vmatprep.subr.mxu0 0.0
      %2500 = vmatpush1.msra.mxu0 %v2289
      %2501 = vmatprep.subr.mxu0 0.0
      %2502 = vmatpush1.msra.mxu0 %v2290
      %2503 = vmatprep.subr.mxu0 0.0
      %2504 = vmatpush1.msra.mxu0 %v2291
      %2505 = vmatprep.subr.mxu0 0.0
      %2506 = vmatpush1.msra.mxu0 %v2292
      %2507 = vmatprep.subr.mxu0 0.0
      %2508 = vmatpush1.msra.mxu0 %v2293
      %2509 = vmatprep.subr.mxu0 0.0
      %2510 = vmatpush1.msra.mxu0 %v2294
      %2511 = vmatprep.subr.mxu0 0.0
      %2512 = vmatpush1.msra.mxu0 %v2295
      %2513 = vmatprep.subr.mxu0 0.0
      %2514 = vmatpush1.msra.mxu0 %v2296
      %2515 = vmatprep.subr.mxu0 0.0
      %2516 = vmatpush1.msra.mxu0 %v2297
      %2517 = vmatprep.subr.mxu0 0.0
      %2518 = vmatpush1.msra.mxu0 %v2298
      %2519 = vmatprep.subr.mxu0 0.0
      %2520 = vmatpush1.msra.mxu0 %v2299
      %2521 = vmatprep.subr.mxu0 0.0
      %2522 = vmatpush1.msra.mxu0 %v2300
      %2523 = vmatprep.subr.mxu0 0.0
      %2524 = vmatpush1.msra.mxu0 %v2301
      %2525 = vmatprep.subr.mxu0 0.0
      %2526 = vmatpush1.msra.mxu0 %v2302
      %2527 = vmatprep.subr.mxu0 0.0
      %2528 = vmatpush1.msra.mxu0 %v2303
      %2529 = vmatprep.subr.mxu0 0.0
      %2530 = vmatpush1.msra.mxu0 %v2304
      %2531 = vmatprep.subr.mxu0 0.0
      %2532 = vmatpush1.msra.mxu0 %v2305
      %2533 = vmatprep.subr.mxu0 0.0
      %2534 = vmatpush1.msra.mxu0 %v2306
      %2535 = vmatprep.subr.mxu0 0.0
      %2536 = vmatpush1.msra.mxu0 %v2307
      %2537 = vmatprep.subr.mxu0 0.0
      %2538 = vmatpush1.msra.mxu0 %v2308
      %2539 = vmatprep.subr.mxu0 0.0
      %2540 = vmatpush1.msra.mxu0 %v2309
      %2541 = vmatprep.subr.mxu0 0.0
      %2542 = vmatpush1.msra.mxu0 %v2310
      %2543 = vmatprep.subr.mxu0 0.0
      %2544 = vmatpush1.msra.mxu0 %v2311
      %2545 = vmatprep.subr.mxu0 0.0
      %2546 = vmatpush1.msra.mxu0 %v2312
      %2547 = vmatprep.subr.mxu0 0.0
      %2548 = vmatpush1.msra.mxu0 %v2313
      %2549 = vmatprep.subr.mxu0 0.0
      %2550 = vmatpush1.msra.mxu0 %v2314
      %2551 = vmatprep.subr.mxu0 0.0
      %2552 = vmatpush1.msra.mxu0 %v2315
      %2553 = vmatprep.subr.mxu0 0.0
      %2554 = vmatpush1.msra.mxu0 %v2316
      %2555 = vmatprep.subr.mxu0 0.0
      %2556 = vmatpush1.msra.mxu0 %v2317
      %2557 = vmatprep.subr.mxu0 0.0
      %2558 = vmatpush1.msra.mxu0 %v2318
      %2559 = vmatprep.subr.mxu0 0.0
      %2560 = vmatpush1.msra.mxu0 %v2319
      %2561 = vmatprep.mubr.f32.mxu0 %v841
      %2562 = vmatmul.mubr.f32.gmra.mrb[0].mxu0 %v839
      %v2563 = vpop.f32.mrb[0].mxu0
      %v2564 = vadd.f32 %v2489, %v2563
      %v2565 = vpop.f32.mrb[0].mxu0
      %2566 = vmatprep.mubr.f32.mxu0 %v847
      %2567 = vmatmul.mubr.f32.gmra.mrb[0].mxu0 %v845
      %v2568 = vpop.f32.mrb[0].mxu0
      %v2569 = vadd.f32 %v2494, %v2568
      %v2570 = vpop.f32.mrb[0].mxu0
      %2571 = vdwg.mxu0
      %2572 = vst.msk [vmem:[%s732] sm:$0xff] %vm2405, %v2564
      %2573 = vst.msk [vmem:[%s732 + $0x8] sm:$0xff] %vm2405, %v2569
      %p2574 = scmp.lt.s32.totalorder %s34, 1
      %s2575 = scalar_select %p2574, %s34, 1
      %s2576 = smul.addr %s2575, 2
      %s2577 = smul.addr %s2576, 8
      %s2578 = scalar_lea.vmem %s20, %s2577
      %p2579 = scmp.lt.s32.totalorder %s34, 1
      %s2580 = scalar_select %p2579, %s34, 1
      %s2581 = smul.addr %s2580, 2
      %s2582 = smul.addr %s2581, 8
      %s2583 = scalar_lea.vmem %s21, %s2582
      %p2584 = scmp.lt.s32.totalorder %s34, 1
      %s2585 = scalar_select %p2584, %s34, 1
      %s2586 = smul.addr %s2585, 2
      %s2587 = smul.addr %s2586, 8
      %s2588 = scalar_lea.vmem %s22, %s2587
      // Predicated region
      $region101: #{bifpn_forward.1} parent=99 // pred_check
        %p2589 = pneg %p487
      $region102: #{bifpn_forward.1} parent=99 // pred_check_branch
        %2591 = sbr.rel (%p2589) target = $region104
      $region103: #{bifpn_forward.1} parent=99 // pred_region
        _
      $region104: #{bifpn_forward.1} parent=99 // pred_fallthru
        _
      // Predicated region
      $region105: #{bifpn_forward.1} parent=99 // pred_check
        %p2592 = pneg %p513
      $region106: #{bifpn_forward.1} parent=99 // pred_check_branch
        %2594 = sbr.rel (%p2592) target = $region108
      $region107: #{bifpn_forward.1} parent=99 // pred_region
        _
      $region108: #{bifpn_forward.1} parent=99 // pred_fallthru
        _
      // Predicated region
      $region109: #{bifpn_forward.1} parent=99 // pred_check
        %p2595 = pneg %p539
      $region110: #{bifpn_forward.1} parent=99 // pred_check_branch
        %2597 = sbr.rel (%p2595) target = $region112
      $region111: #{bifpn_forward.1} parent=99 // pred_region
        _
      $region112: #{bifpn_forward.1} parent=99 // pred_fallthru
        _
    $region100: #{bifpn_forward.1} parent=5 // pred_fallthru
      _
    %p2598 = scmp.le.s32.totalorder 2, %s29
    // Predicated region
    $region113: #{bifpn_forward.1} parent=5 // pred_check
      %p2599 = pneg %p2598
    $region114: #{bifpn_forward.1} parent=5 // pred_check_branch
      %2601 = sbr.rel (%p2599) target = $region116
    $region115: #{bifpn_forward.1} parent=5 // pred_region
      %s2602 = ssub.s32 %s29, 2
      // Predicated region
      $region117: #{bifpn_forward.1} parent=115 // pred_check
        %p2603 = pneg %p493
      $region118: #{bifpn_forward.1} parent=115 // pred_check_branch
        %2605 = sbr.rel (%p2603) target = $region120
      $region119: #{bifpn_forward.1} parent=115 // pred_region
        %p2606 = scmp.lt.s32.totalorder %s35, 1
        %s2607 = scalar_select %p2606, %s35, 1
        %s2608 = smul.addr %s2607, 2
        %s2609 = smul.addr %s2608, 8
        %s2610 = scalar_lea.vmem %s20, %s2609
      $region120: #{bifpn_forward.1} parent=115 // pred_fallthru
        _
      // Predicated region
      $region121: #{bifpn_forward.1} parent=115 // pred_check
        %p2611 = pneg %p519
      $region122: #{bifpn_forward.1} parent=115 // pred_check_branch
        %2613 = sbr.rel (%p2611) target = $region124
      $region123: #{bifpn_forward.1} parent=115 // pred_region
        %p2614 = scmp.lt.s32.totalorder %s35, 1
        %s2615 = scalar_select %p2614, %s35, 1
        %s2616 = smul.addr %s2615, 2
        %s2617 = smul.addr %s2616, 8
        %s2618 = scalar_lea.vmem %s21, %s2617
      $region124: #{bifpn_forward.1} parent=115 // pred_fallthru
        _
      // Predicated region
      $region125: #{bifpn_forward.1} parent=115 // pred_check
        %p2619 = pneg %p545
      $region126: #{bifpn_forward.1} parent=115 // pred_check_branch
        %2621 = sbr.rel (%p2619) target = $region128
      $region127: #{bifpn_forward.1} parent=115 // pred_region
        %p2622 = scmp.lt.s32.totalorder %s35, 1
        %s2623 = scalar_select %p2622, %s35, 1
        %s2624 = smul.addr %s2623, 2
        %s2625 = smul.addr %s2624, 8
        %s2626 = scalar_lea.vmem %s22, %s2625
      $region128: #{bifpn_forward.1} parent=115 // pred_fallthru
        _
    $region116: #{bifpn_forward.1} parent=5 // pred_fallthru
      _
  $region6: #{bifpn_forward.1} parent=0 // loop_footer
    %s33 = sadd.s32 1, %s29
  $region7: #{bifpn_forward.1} parent=0 // loop_footer_branch
    %28 = sbr.rel target = $region3
  $region8: #{bifpn_forward.1} parent=0 // loop_exit
    _

</llo_original>
